<compile_context>
chip_gen: v5e
topology: v5e:2x2
jax: 0.10.0
libtpu: 0.0.40
codegen_flags: <defaults>
</compile_context>

<pallas_src>
import numpy as np
import jax
import jax.numpy as jnp
from jax import lax
from jax.experimental import pallas as pl
from jax.experimental.pallas import tpu as pltpu

# ------------------------- small config (consistent with ErbDecoder) ----------
B = 2            # batch
T = 8            # time frames
C = 8            # conv_ch
NB_ERB = 16      # nb_erb (must be divisible by 8)
assert NB_ERB % 8 == 0
F8 = NB_ERB // 4     # freq bins of e3 / e2
F16 = NB_ERB // 2    # freq bins of e1
F32 = NB_ERB         # freq bins of e0 / output
H = 64               # emb_hidden_dim
I = C * F8           # GRU input size  == conv_ch * nb_erb // 4
O = C * F8           # fc_emb output size
D8, D16, D32 = F8 * C, F16 * C, F32 * C      # 32, 64, 128
BP = 8               # batch rows per time step, padded to a full sublane group
NP = T * BP          # padded row count processed by the kernel (real rows: 8t+b, b<B)
BN_EPS = 1e-5

# wdec slab row offsets: [wfc | M3 | M2 | M1 | M0] (all multiples of 16 -> bf16 aligned)
RW_FC = 0
RW_M3 = RW_FC + H        # 64
RW_M2 = RW_M3 + D8       # 96
RW_M1 = RW_M2 + D8       # 128
RW_M0 = RW_M1 + D16      # 192
RW_END = RW_M0 + D32     # 320

# cvec row indices (one (16,256) f32 constants block, one DMA)
CV_BIH, CV_BHH, CV_SPW, CV_BPW, CV_BFC, CV_C3, CV_C2, CV_C1, CV_C0 = range(9)


# ------------------------------- parameters -----------------------------------
def init_params(key):
    keys = iter(jax.random.split(key, 80))

    def nrm(shape, s):
        return jax.random.normal(next(keys), shape, jnp.float32) * s

    def bn_fold(c):
        gamma = 1.0 + 0.1 * jax.random.normal(next(keys), (c,), jnp.float32)
        beta = 0.1 * jax.random.normal(next(keys), (c,), jnp.float32)
        mean = 0.1 * jax.random.normal(next(keys), (c,), jnp.float32)
        var = jax.random.uniform(next(keys), (c,), jnp.float32, minval=0.5, maxval=1.5)
        a = gamma / jnp.sqrt(var + BN_EPS)
        b = beta - mean * a
        return a, b

    p = {}
    # GroupedGRU(groups=1, num_layers=1, add_outputs=True) == plain nn.GRU; gates (r, z, n)
    p['wih'] = nrm((3, I, H), 1.0 / np.sqrt(H))
    p['whh'] = nrm((3, H, H), 1.0 / np.sqrt(H))
    p['bih'] = nrm((3, 1, H), 0.1)
    p['bhh'] = nrm((3, 1, H), 0.1)
    # fc_emb: GroupedLinear(groups=1) == nn.Linear(H, C*F8), followed by ReLU
    p['wfc'] = nrm((H, O), 1.0 / np.sqrt(H))
    p['bfc'] = nrm((1, O), 0.1)
    # conv{3,2,1,0}p: depthwise 1x1 conv (per-channel scale, bias=False) + BN + ReLU
    for n in ('3p', '2p', '1p', '0p'):
        p['w' + n] = nrm((C,), 0.5)
        p['a' + n], p['b' + n] = bn_fold(C)
    # convt3: depthwise (1,3) conv pad(0,1) + pointwise 1x1 + BN + ReLU
    p['wd3'] = nrm((C, 3), 0.4)
    p['wp3'] = nrm((C, C), 1.0 / np.sqrt(C))
    p['a3'], p['b3'] = bn_fold(C)
    # convt2 / convt1: depthwise (1,3) ConvTranspose (fstride=2, pad(0,1), outpad(0,1))
    #                  + pointwise 1x1 + BN + ReLU
    p['wtd2'] = nrm((C, 3), 0.4)
    p['wp2'] = nrm((C, C), 1.0 / np.sqrt(C))
    p['a2'], p['b2'] = bn_fold(C)
    p['wtd1'] = nrm((C, 3), 0.4)
    p['wp1'] = nrm((C, C), 1.0 / np.sqrt(C))
    p['a1'], p['b1'] = bn_fold(C)
    # conv0_out: full (1,3) conv C->1 (bias=False) + BN(1) + Sigmoid
    p['w0'] = nrm((C, 3), 0.4)
    p['a0'], p['b0'] = bn_fold(1)
    return p


# ----------------- banded matrices for the (1,3) F-axis convolutions ----------
def conv_shift(F):   # S[k, f, g] = 1 if f == g - 1 + k   (Conv2d k=3, stride 1, pad 1)
    S = np.zeros((3, F, F), np.float32)
    for k in range(3):
        for g in range(F):
            f = g - 1 + k
            if 0 <= f < F:
                S[k, f, g] = 1.0
    return jnp.asarray(S)


def tconv_shift(F):  # S[k, i, g] = 1 if g == 2*i + k - 1  (ConvT k=3, stride 2, pad 1, outpad 1)
    S = np.zeros((3, F, 2 * F), np.float32)
    for k in range(3):
        for i in range(F):
            g = 2 * i + k - 1
            if 0 <= g < 2 * F:
                S[k, i, g] = 1.0
    return jnp.asarray(S)


def tile_c(v, F):    # (C,) -> (F*C,), f-major ordering (matches f*C + c flat index)
    return jnp.broadcast_to(v, (F, v.shape[0])).reshape(-1)


def prepare_operands(p):
    """Param-only precompute (done ONCE, outside the forward pass)."""
    # --- GRU weights, gates concatenated [r | z | n] along the output axis ---
    wih = jnp.concatenate([p['wih'][0], p['wih'][1], p['wih'][2]], axis=1)   # (I, 3H)
    whh = jnp.concatenate([p['whh'][0], p['whh'][1], p['whh'][2]], axis=1)   # (H, 3H)
    # bhh_r / bhh_z folded into the input bias (exact rewrite); only bhh_n stays
    # separate because it sits inside r * (h@Whh_n + bhh_n).
    bih_fold = jnp.concatenate([p['bih'][0] + p['bhh'][0],
                                p['bih'][1] + p['bhh'][1],
                                p['bih'][2]], axis=1)                        # (1, 3H)
    bhh_n = jnp.concatenate([jnp.zeros((1, H), jnp.float32),
                             jnp.zeros((1, H), jnp.float32),
                             p['bhh'][2]], axis=1)                           # (1, 3H)
    wgru = jnp.concatenate([wih, whh], axis=0).astype(jnp.float32)           # (I+H, 3H)

    # --- banded matrices over the flattened F*C axis with BN scales folded in ---
    M3 = jnp.einsum('kfg,ck,dc->fcgd', conv_shift(F8), p['wd3'], p['wp3']).reshape(D8, D8)
    M3 = M3 * tile_c(p['a3'], F8)[None, :]
    M2 = jnp.einsum('kig,ck,dc->icgd', tconv_shift(F8), p['wtd2'], p['wp2']).reshape(D8, D16)
    M2 = M2 * tile_c(p['a2'], F16)[None, :]
    M1 = jnp.einsum('kig,ck,dc->icgd', tconv_shift(F16), p['wtd1'], p['wp1']).reshape(D16, D32)
    M1 = M1 * tile_c(p['a1'], F32)[None, :]
    M0 = jnp.einsum('kfg,ck->fcg', conv_shift(F32), p['w0']).reshape(D32, F32) * p['a0']

    # --- decoder weight slab: bf16, 128-lane padded, row-stacked [wfc; M3; M2; M1; M0] ---
    def padc(a):
        return jnp.pad(a, ((0, 0), (0, 128 - a.shape[1])))
    wdec = jnp.concatenate(
        [padc(p['wfc']), padc(M3), padc(M2), padc(M1), padc(M0)],
        axis=0).astype(jnp.bfloat16)                                          # (320, 128)
    assert wdec.shape == (RW_END, 128)

    # --- one f32 constants block: biases + pointwise-conv scale/bias vectors ---
    spw = jnp.concatenate([tile_c(p['w3p'] * p['a3p'], F8),
                           tile_c(p['w2p'] * p['a2p'], F8),
                           tile_c(p['w1p'] * p['a1p'], F16),
                           tile_c(p['w0p'] * p['a0p'], F32)])                 # (256,)
    bpw = jnp.concatenate([tile_c(p['b3p'], F8), tile_c(p['b2p'], F8),
                           tile_c(p['b1p'], F16), tile_c(p['b0p'], F32)])     # (256,)

    cvec = jnp.zeros((16, 256), jnp.float32)

    def put(cv, row, vec):
        vec = vec.reshape(-1)
        return cv.at[row, :vec.shape[0]].set(vec)

    cvec = put(cvec, CV_BIH, bih_fold)
    cvec = put(cvec, CV_BHH, bhh_n)
    cvec = put(cvec, CV_SPW, spw)
    cvec = put(cvec, CV_BPW, bpw)
    cvec = put(cvec, CV_BFC, p['bfc'])
    cvec = put(cvec, CV_C3, tile_c(p['b3'], F8))
    cvec = put(cvec, CV_C2, tile_c(p['b2'], F16))
    cvec = put(cvec, CV_C1, tile_c(p['b1'], F32))
    cvec = put(cvec, CV_C0, jnp.broadcast_to(p['b0'], (F32,)))

    return dict(wgru=wgru, cvec=cvec, wdec=wdec)


# --------------------------------- fused kernel --------------------------------
def fused_kernel(emb_ref, enc_ref, wgru_ref, cvec_ref, wdec_ref, out_ref):
    f32 = jnp.float32
    bf16 = jnp.bfloat16

    # ---- GRU input projection for ALL padded time-major rows: one f32 matmul ----
    wih = wgru_ref[0:I, :]                              # (I, 3H)  f32
    whh = wgru_ref[I:I + H, :]                          # (H, 3H)  f32
    bih = cvec_ref[CV_BIH:CV_BIH + 1, 0:3 * H]          # bih + [bhh_r|bhh_z|0]
    bhh_n = cvec_ref[CV_BHH:CV_BHH + 1, 0:3 * H]        # [0|0|bhh_n]
    gi_all = jnp.dot(emb_ref[...], wih, preferred_element_type=f32) + bih    # (NP, 3H)

    # ---- serial recurrence, fully unrolled (T=8); 8-row sublane-aligned slices ----
    h = jnp.zeros((BP, H), f32)
    hs = []
    for t in range(T):
        gi = gi_all[t * BP:(t + 1) * BP, :]                                  # (8, 3H)
        gh = jnp.dot(h, whh, preferred_element_type=f32) + bhh_n             # (8, 3H)
        rz = jax.nn.sigmoid(gi[:, 0:2 * H] + gh[:, 0:2 * H])                 # one EUP slab
        r = rz[:, 0:H]
        z = rz[:, H:2 * H]
        n = jnp.tanh(gi[:, 2 * H:3 * H] + r * gh[:, 2 * H:3 * H])
        h = n + z * (h - n)
        hs.append(h)
    hs_all = jnp.concatenate(hs, axis=0)                 # (NP, H), kept in vregs

    # ---- fc_emb (GroupedLinear groups=1 + ReLU): bf16 MXU, f32 accumulation ----
    wfc = wdec_ref[RW_FC:RW_FC + H, 0:O]                 # (H, O) bf16
    emb_sp = jnp.maximum(
        jnp.dot(hs_all.astype(bf16), wfc, preferred_element_type=f32)
        + cvec_ref[CV_BFC:CV_BFC + 1, 0:O], 0.0)         # (NP, O) f32

    # ---- decoder conv pathway ----
    # all four pointwise-conv + BN + ReLU skips as ONE full-256-lane VPU op
    u = jnp.maximum(enc_ref[...] * cvec_ref[CV_SPW:CV_SPW + 1, :]
                    + cvec_ref[CV_BPW:CV_BPW + 1, :], 0.0)                   # (NP, 256)

    m3 = wdec_ref[RW_M3:RW_M3 + D8, 0:D8]                # (32, 32)  bf16
    m2 = wdec_ref[RW_M2:RW_M2 + D8, 0:D16]               # (32, 64)  bf16
    m1 = wdec_ref[RW_M1:RW_M1 + D16, 0:D32]              # (64, 128) bf16
    m0 = wdec_ref[RW_M0:RW_M0 + D32, 0:F32]              # (128, 16) bf16

    # e3 = convt3(conv3p(e3) + emb)
    x3 = u[:, 0:D8] + emb_sp
    y3 = jnp.maximum(jnp.dot(x3.astype(bf16), m3, preferred_element_type=f32)
                     + cvec_ref[CV_C3:CV_C3 + 1, 0:D8], 0.0)
    # e2 = convt2(conv2p(e2) + e3)
    x2 = u[:, D8:2 * D8] + y3
    y2 = jnp.maximum(jnp.dot(x2.astype(bf16), m2, preferred_element_type=f32)
                     + cvec_ref[CV_C2:CV_C2 + 1, 0:D16], 0.0)
    # e1 = convt1(conv1p(e1) + e2)
    x1 = u[:, 2 * D8:2 * D8 + D16] + y2
    y1 = jnp.maximum(jnp.dot(x1.astype(bf16), m1, preferred_element_type=f32)
                     + cvec_ref[CV_C1:CV_C1 + 1, 0:D32], 0.0)
    # m = conv0_out(conv0p(e0) + e1)
    x0 = u[:, 128:256] + y1
    zlog = (jnp.dot(x0.astype(bf16), m0, preferred_element_type=f32)
            + cvec_ref[CV_C0:CV_C0 + 1, 0:F32])
    out_ref[...] = jax.nn.sigmoid(zlog)


# --------------------------------- wrapper --------------------------------------
def _full_spec(shape):
    zeros = (0,) * len(shape)
    return pl.BlockSpec(shape, lambda i, z=zeros: z)


@jax.jit
def erb_decoder_forward(emb, e3, e2, e1, e0, ops):
    # GRU input rows: time-major, batch padded B=2 -> 8 (full sublane group / step).
    er = jnp.pad(jnp.transpose(emb, (1, 0, 2)), ((0, 0), (0, BP - B), (0, 0)))
    emb_pad = er.reshape(NP, I)                                           # (NP, I)

    def to_rows(x):                      # (B, C, T, F) -> (NP, F*C), padded rows zero
        b_, c_, t_, f_ = x.shape
        r = jnp.transpose(x, (2, 0, 3, 1))                                # (T, B, F, C)
        r = jnp.pad(r, ((0, 0), (0, BP - b_), (0, 0), (0, 0)))
        return r.reshape(t_ * BP, f_ * c_)

    # lane-packed encoder slab: [e3 | e2 | e1 | e0] -> (NP, 256)
    enc = jnp.concatenate([to_rows(e3), to_rows(e2), to_rows(e1), to_rows(e0)], axis=1)

    operands = (emb_pad, enc, ops['wgru'], ops['cvec'], ops['wdec'])

    m_rows = pl.pallas_call(
        fused_kernel,
        out_shape=jax.ShapeDtypeStruct((NP, F32), jnp.float32),
        grid_spec=pltpu.PrefetchScalarGridSpec(
            num_scalar_prefetch=0, grid=(1,),
            in_specs=[_full_spec(x.shape) for x in operands],
            out_specs=_full_spec((NP, F32))),
        compiler_params=pltpu.CompilerParams(dimension_semantics=("arbitrary",)),
    )(*operands)

    # (NP, F32) padded time-major -> NCHW (B, 1, T, nb_erb)
    m = m_rows.reshape(T, BP, F32)[:, :B, :]
    return jnp.transpose(m, (1, 0, 2))[:, None, :, :]


# --------------------------- pure-JAX reference (for validation) ----------------
def ref_forward(emb, e3, e2, e1, e0, p):
    def step(h, x):
        gir = x @ p['wih'][0] + p['bih'][0]
        giz = x @ p['wih'][1] + p['bih'][1]
        gin = x @ p['wih'][2] + p['bih'][2]
        ghr = h @ p['whh'][0] + p['bhh'][0]
        ghz = h @ p['whh'][1] + p['bhh'][1]
        ghn = h @ p['whh'][2] + p['bhh'][2]
        r = jax.nn.sigmoid(gir + ghr)
        z = jax.nn.sigmoid(giz + ghz)
        n = jnp.tanh(gin + r * ghn)
        h_new = (1.0 - z) * n + z * h
        return h_new, h_new

    h0 = jnp.zeros((B, H), jnp.float32)
    _, hs = lax.scan(step, h0, jnp.transpose(emb, (1, 0, 2)))
    gru_out = jnp.transpose(hs, (1, 0, 2))
    fc = jnp.maximum(gru_out @ p['wfc'] + p['bfc'], 0.0)
    emb_sp = fc.reshape(B, T, F8, C)

    cl = lambda x: jnp.transpose(x, (0, 2, 3, 1))          # NCHW -> (B, T, F, C)

    def pconv(x, w, a, b):
        return jnp.maximum(x * (w * a) + b, 0.0)

    def dw(x, k):
        xp = jnp.pad(x, ((0, 0), (0, 0), (1, 1), (0, 0)))
        return xp[:, :, :-2, :] * k[:, 0] + xp[:, :, 1:-1, :] * k[:, 1] + xp[:, :, 2:, :] * k[:, 2]

    def tdw(x, k):
        b_, t_, f_, c_ = x.shape
        xn = jnp.concatenate([x[:, :, 1:, :], jnp.zeros((b_, t_, 1, c_), x.dtype)], axis=2)
        even = x * k[:, 1]
        odd = xn * k[:, 0] + x * k[:, 2]
        return jnp.stack([even, odd], axis=3).reshape(b_, t_, 2 * f_, c_)

    def pw_bn_relu(x, w, a, b):
        return jnp.maximum(jnp.einsum('btfc,dc->btfd', x, w) * a + b, 0.0)

    x3 = pconv(cl(e3), p['w3p'], p['a3p'], p['b3p']) + emb_sp
    x3 = pw_bn_relu(dw(x3, p['wd3']), p['wp3'], p['a3'], p['b3'])
    x2 = pconv(cl(e2), p['w2p'], p['a2p'], p['b2p']) + x3
    x2 = pw_bn_relu(tdw(x2, p['wtd2']), p['wp2'], p['a2'], p['b2'])
    x1 = pconv(cl(e1), p['w1p'], p['a1p'], p['b1p']) + x2
    x1 = pw_bn_relu(tdw(x1, p['wtd1']), p['wp1'], p['a1'], p['b1'])
    x0 = pconv(cl(e0), p['w0p'], p['a0p'], p['b0p']) + x1
    z = jnp.sum(dw(x0, p['w0']), axis=-1) * p['a0'] + p['b0']
    m = jax.nn.sigmoid(z)
    return jnp.transpose(m[..., None], (0, 3, 1, 2))        # (B, 1, T, nb_erb)


# ------------------------------------ main ---------------------------------------
if __name__ == "__main__":
    key = jax.random.PRNGKey(0)
    kp, k_emb, k3, k2, k1, k0 = jax.random.split(key, 6)
    p = init_params(kp)
    # Param-only operand build: done ONCE, outside the forward pass.
    ops = prepare_operands(p)

    emb = jax.random.normal(k_emb, (B, T, I), jnp.float32)
    e3 = jax.random.normal(k3, (B, C, T, F8), jnp.float32)
    e2 = jax.random.normal(k2, (B, C, T, F8), jnp.float32)
    e1 = jax.random.normal(k1, (B, C, T, F16), jnp.float32)
    e0 = jax.random.normal(k0, (B, C, T, F32), jnp.float32)

    m = jax.block_until_ready(erb_decoder_forward(emb, e3, e2, e1, e0, ops))
    m_ref = jax.block_until_ready(ref_forward(emb, e3, e2, e1, e0, p))

    assert m.shape == (B, 1, T, NB_ERB), m.shape
    assert bool(jnp.all(jnp.isfinite(m)))
    # Tolerance 3e-2 (instead of the 5e-3 used for the all-f32 variant) accounts for
    # the bf16 MXU operands on the 4-stage decoder matmul chain; GRU stays f32.
    err = float(jnp.max(jnp.abs(m - m_ref)))
    assert err < 3e-2, f"mismatch vs reference: {err}"
    print("KERNEL_OK")
</pallas_src>

<mosaic_0001>
module attributes {stable_mosaic.version = 11 : i64} {
  func.func @fused_kernel(%arg0: i32, %arg1: memref<64x32xf32, #tpu.memory_space<vmem>>, %arg2: memref<64x256xf32, #tpu.memory_space<vmem>>, %arg3: memref<96x192xf32, #tpu.memory_space<vmem>>, %arg4: memref<16x256xf32, #tpu.memory_space<vmem>>, %arg5: memref<320x128xbf16, #tpu.memory_space<vmem>>, %arg6: memref<64x16xf32, #tpu.memory_space<vmem>>) attributes {dimension_semantics = [#tpu.dimension_semantics<arbitrary>], iteration_bounds = array<i64: 1>, scalar_prefetch = 0 : i64, scratch_operands = 0 : i64, tpu.core_type = #tpu.core_type<tc>, window_params = [{pipeline_mode = #tpu.pipeline_mode<synchronous>, transform_indices = @transform_0, window_bounds = array<i64: 64, 32>}, {pipeline_mode = #tpu.pipeline_mode<synchronous>, transform_indices = @transform_1, window_bounds = array<i64: 64, 256>}, {pipeline_mode = #tpu.pipeline_mode<synchronous>, transform_indices = @transform_2, window_bounds = array<i64: 96, 192>}, {pipeline_mode = #tpu.pipeline_mode<synchronous>, transform_indices = @transform_3, window_bounds = array<i64: 16, 256>}, {pipeline_mode = #tpu.pipeline_mode<synchronous>, transform_indices = @transform_4, window_bounds = array<i64: 320, 128>}, {pipeline_mode = #tpu.pipeline_mode<synchronous>, transform_indices = @transform_5, window_bounds = array<i64: 64, 16>}]} {
    %c0 = arith.constant 0 : index
    %c0_0 = arith.constant 0 : index
    %0 = vector.load %arg3[%c0, %c0_0] : memref<96x192xf32, #tpu.memory_space<vmem>>, vector<32x192xf32>
    %c32 = arith.constant 32 : index
    %c0_1 = arith.constant 0 : index
    %1 = vector.load %arg3[%c32, %c0_1] : memref<96x192xf32, #tpu.memory_space<vmem>>, vector<64x192xf32>
    %c0_2 = arith.constant 0 : index
    %c0_3 = arith.constant 0 : index
    %2 = vector.load %arg4[%c0_2, %c0_3] : memref<16x256xf32, #tpu.memory_space<vmem>>, vector<1x192xf32>
    %c1 = arith.constant 1 : index
    %c0_4 = arith.constant 0 : index
    %3 = vector.load %arg4[%c1, %c0_4] : memref<16x256xf32, #tpu.memory_space<vmem>>, vector<1x192xf32>
    %c0_5 = arith.constant 0 : index
    %c0_6 = arith.constant 0 : index
    %4 = vector.load %arg1[%c0_5, %c0_6] : memref<64x32xf32, #tpu.memory_space<vmem>>, vector<64x32xf32>
    %cst = arith.constant dense<0.000000e+00> : vector<64x192xf32>
    %5 = tpu.matmul %4, %0, %cst {dimension_numbers = #tpu.dot_dimension_numbers<[1], [0], [0], [1], [0, 0, 1, 1], [], []>} : vector<64x32xf32>, vector<32x192xf32>, vector<64x192xf32> -> vector<64x192xf32>
    %6 = vector.broadcast %2 : vector<1x192xf32> to vector<64x192xf32>
    %7 = arith.addf %5, %6 : vector<64x192xf32>
    %cst_7 = arith.constant 0.000000e+00 : f32
    %8 = vector.broadcast %cst_7 : f32 to vector<8x64xf32>
    %9 = vector.extract_strided_slice %7 {offsets = [0, 0], sizes = [8, 192], strides = [1, 1]} : vector<64x192xf32> to vector<8x192xf32>
    %cst_8 = arith.constant dense<0.000000e+00> : vector<8x192xf32>
    %10 = tpu.matmul %8, %1, %cst_8 {dimension_numbers = #tpu.dot_dimension_numbers<[1], [0], [0], [1], [0, 0, 1, 1], [], []>} : vector<8x64xf32>, vector<64x192xf32>, vector<8x192xf32> -> vector<8x192xf32>
    %11 = vector.broadcast %3 : vector<1x192xf32> to vector<8x192xf32>
    %12 = arith.addf %10, %11 : vector<8x192xf32>
    %13 = vector.extract_strided_slice %9 {offsets = [0, 0], sizes = [8, 128], strides = [1, 1]} : vector<8x192xf32> to vector<8x128xf32>
    %14 = vector.extract_strided_slice %12 {offsets = [0, 0], sizes = [8, 128], strides = [1, 1]} : vector<8x192xf32> to vector<8x128xf32>
    %15 = arith.addf %13, %14 : vector<8x128xf32>
    %16 = arith.negf %15 : vector<8x128xf32>
    %17 = math.exp %16 : vector<8x128xf32>
    %cst_9 = arith.constant 1.000000e+00 : f32
    %18 = vector.broadcast %cst_9 : f32 to vector<8x128xf32>
    %19 = arith.addf %18, %17 : vector<8x128xf32>
    %20 = arith.divf %18, %19 : vector<8x128xf32>
    %21 = vector.extract_strided_slice %20 {offsets = [0, 0], sizes = [8, 64], strides = [1, 1]} : vector<8x128xf32> to vector<8x64xf32>
    %22 = vector.extract_strided_slice %20 {offsets = [0, 64], sizes = [8, 64], strides = [1, 1]} : vector<8x128xf32> to vector<8x64xf32>
    %23 = vector.extract_strided_slice %9 {offsets = [0, 128], sizes = [8, 64], strides = [1, 1]} : vector<8x192xf32> to vector<8x64xf32>
    %24 = vector.extract_strided_slice %12 {offsets = [0, 128], sizes = [8, 64], strides = [1, 1]} : vector<8x192xf32> to vector<8x64xf32>
    %25 = arith.mulf %21, %24 : vector<8x64xf32>
    %26 = arith.addf %23, %25 : vector<8x64xf32>
    %27 = math.tanh %26 : vector<8x64xf32>
    %28 = arith.subf %8, %27 : vector<8x64xf32>
    %29 = arith.mulf %22, %28 : vector<8x64xf32>
    %30 = arith.addf %27, %29 : vector<8x64xf32>
    %31 = vector.extract_strided_slice %7 {offsets = [8, 0], sizes = [8, 192], strides = [1, 1]} : vector<64x192xf32> to vector<8x192xf32>
    %cst_10 = arith.constant dense<0.000000e+00> : vector<8x192xf32>
    %32 = tpu.matmul %30, %1, %cst_10 {dimension_numbers = #tpu.dot_dimension_numbers<[1], [0], [0], [1], [0, 0, 1, 1], [], []>} : vector<8x64xf32>, vector<64x192xf32>, vector<8x192xf32> -> vector<8x192xf32>
    %33 = vector.broadcast %3 : vector<1x192xf32> to vector<8x192xf32>
    %34 = arith.addf %32, %33 : vector<8x192xf32>
    %35 = vector.extract_strided_slice %31 {offsets = [0, 0], sizes = [8, 128], strides = [1, 1]} : vector<8x192xf32> to vector<8x128xf32>
    %36 = vector.extract_strided_slice %34 {offsets = [0, 0], sizes = [8, 128], strides = [1, 1]} : vector<8x192xf32> to vector<8x128xf32>
    %37 = arith.addf %35, %36 : vector<8x128xf32>
    %38 = arith.negf %37 : vector<8x128xf32>
    %39 = math.exp %38 : vector<8x128xf32>
    %cst_11 = arith.constant 1.000000e+00 : f32
    %40 = vector.broadcast %cst_11 : f32 to vector<8x128xf32>
    %41 = arith.addf %40, %39 : vector<8x128xf32>
    %42 = arith.divf %40, %41 : vector<8x128xf32>
    %43 = vector.extract_strided_slice %42 {offsets = [0, 0], sizes = [8, 64], strides = [1, 1]} : vector<8x128xf32> to vector<8x64xf32>
    %44 = vector.extract_strided_slice %42 {offsets = [0, 64], sizes = [8, 64], strides = [1, 1]} : vector<8x128xf32> to vector<8x64xf32>
    %45 = vector.extract_strided_slice %31 {offsets = [0, 128], sizes = [8, 64], strides = [1, 1]} : vector<8x192xf32> to vector<8x64xf32>
    %46 = vector.extract_strided_slice %34 {offsets = [0, 128], sizes = [8, 64], strides = [1, 1]} : vector<8x192xf32> to vector<8x64xf32>
    %47 = arith.mulf %43, %46 : vector<8x64xf32>
    %48 = arith.addf %45, %47 : vector<8x64xf32>
    %49 = math.tanh %48 : vector<8x64xf32>
    %50 = arith.subf %30, %49 : vector<8x64xf32>
    %51 = arith.mulf %44, %50 : vector<8x64xf32>
    %52 = arith.addf %49, %51 : vector<8x64xf32>
    %53 = vector.extract_strided_slice %7 {offsets = [16, 0], sizes = [8, 192], strides = [1, 1]} : vector<64x192xf32> to vector<8x192xf32>
    %cst_12 = arith.constant dense<0.000000e+00> : vector<8x192xf32>
    %54 = tpu.matmul %52, %1, %cst_12 {dimension_numbers = #tpu.dot_dimension_numbers<[1], [0], [0], [1], [0, 0, 1, 1], [], []>} : vector<8x64xf32>, vector<64x192xf32>, vector<8x192xf32> -> vector<8x192xf32>
    %55 = vector.broadcast %3 : vector<1x192xf32> to vector<8x192xf32>
    %56 = arith.addf %54, %55 : vector<8x192xf32>
    %57 = vector.extract_strided_slice %53 {offsets = [0, 0], sizes = [8, 128], strides = [1, 1]} : vector<8x192xf32> to vector<8x128xf32>
    %58 = vector.extract_strided_slice %56 {offsets = [0, 0], sizes = [8, 128], strides = [1, 1]} : vector<8x192xf32> to vector<8x128xf32>
    %59 = arith.addf %57, %58 : vector<8x128xf32>
    %60 = arith.negf %59 : vector<8x128xf32>
    %61 = math.exp %60 : vector<8x128xf32>
    %cst_13 = arith.constant 1.000000e+00 : f32
    %62 = vector.broadcast %cst_13 : f32 to vector<8x128xf32>
    %63 = arith.addf %62, %61 : vector<8x128xf32>
    %64 = arith.divf %62, %63 : vector<8x128xf32>
    %65 = vector.extract_strided_slice %64 {offsets = [0, 0], sizes = [8, 64], strides = [1, 1]} : vector<8x128xf32> to vector<8x64xf32>
    %66 = vector.extract_strided_slice %64 {offsets = [0, 64], sizes = [8, 64], strides = [1, 1]} : vector<8x128xf32> to vector<8x64xf32>
    %67 = vector.extract_strided_slice %53 {offsets = [0, 128], sizes = [8, 64], strides = [1, 1]} : vector<8x192xf32> to vector<8x64xf32>
    %68 = vector.extract_strided_slice %56 {offsets = [0, 128], sizes = [8, 64], strides = [1, 1]} : vector<8x192xf32> to vector<8x64xf32>
    %69 = arith.mulf %65, %68 : vector<8x64xf32>
    %70 = arith.addf %67, %69 : vector<8x64xf32>
    %71 = math.tanh %70 : vector<8x64xf32>
    %72 = arith.subf %52, %71 : vector<8x64xf32>
    %73 = arith.mulf %66, %72 : vector<8x64xf32>
    %74 = arith.addf %71, %73 : vector<8x64xf32>
    %75 = vector.extract_strided_slice %7 {offsets = [24, 0], sizes = [8, 192], strides = [1, 1]} : vector<64x192xf32> to vector<8x192xf32>
    %cst_14 = arith.constant dense<0.000000e+00> : vector<8x192xf32>
    %76 = tpu.matmul %74, %1, %cst_14 {dimension_numbers = #tpu.dot_dimension_numbers<[1], [0], [0], [1], [0, 0, 1, 1], [], []>} : vector<8x64xf32>, vector<64x192xf32>, vector<8x192xf32> -> vector<8x192xf32>
    %77 = vector.broadcast %3 : vector<1x192xf32> to vector<8x192xf32>
    %78 = arith.addf %76, %77 : vector<8x192xf32>
    %79 = vector.extract_strided_slice %75 {offsets = [0, 0], sizes = [8, 128], strides = [1, 1]} : vector<8x192xf32> to vector<8x128xf32>
    %80 = vector.extract_strided_slice %78 {offsets = [0, 0], sizes = [8, 128], strides = [1, 1]} : vector<8x192xf32> to vector<8x128xf32>
    %81 = arith.addf %79, %80 : vector<8x128xf32>
    %82 = arith.negf %81 : vector<8x128xf32>
    %83 = math.exp %82 : vector<8x128xf32>
    %cst_15 = arith.constant 1.000000e+00 : f32
    %84 = vector.broadcast %cst_15 : f32 to vector<8x128xf32>
    %85 = arith.addf %84, %83 : vector<8x128xf32>
    %86 = arith.divf %84, %85 : vector<8x128xf32>
    %87 = vector.extract_strided_slice %86 {offsets = [0, 0], sizes = [8, 64], strides = [1, 1]} : vector<8x128xf32> to vector<8x64xf32>
    %88 = vector.extract_strided_slice %86 {offsets = [0, 64], sizes = [8, 64], strides = [1, 1]} : vector<8x128xf32> to vector<8x64xf32>
    %89 = vector.extract_strided_slice %75 {offsets = [0, 128], sizes = [8, 64], strides = [1, 1]} : vector<8x192xf32> to vector<8x64xf32>
    %90 = vector.extract_strided_slice %78 {offsets = [0, 128], sizes = [8, 64], strides = [1, 1]} : vector<8x192xf32> to vector<8x64xf32>
    %91 = arith.mulf %87, %90 : vector<8x64xf32>
    %92 = arith.addf %89, %91 : vector<8x64xf32>
    %93 = math.tanh %92 : vector<8x64xf32>
    %94 = arith.subf %74, %93 : vector<8x64xf32>
    %95 = arith.mulf %88, %94 : vector<8x64xf32>
    %96 = arith.addf %93, %95 : vector<8x64xf32>
    %97 = vector.extract_strided_slice %7 {offsets = [32, 0], sizes = [8, 192], strides = [1, 1]} : vector<64x192xf32> to vector<8x192xf32>
    %cst_16 = arith.constant dense<0.000000e+00> : vector<8x192xf32>
    %98 = tpu.matmul %96, %1, %cst_16 {dimension_numbers = #tpu.dot_dimension_numbers<[1], [0], [0], [1], [0, 0, 1, 1], [], []>} : vector<8x64xf32>, vector<64x192xf32>, vector<8x192xf32> -> vector<8x192xf32>
    %99 = vector.broadcast %3 : vector<1x192xf32> to vector<8x192xf32>
    %100 = arith.addf %98, %99 : vector<8x192xf32>
    %101 = vector.extract_strided_slice %97 {offsets = [0, 0], sizes = [8, 128], strides = [1, 1]} : vector<8x192xf32> to vector<8x128xf32>
    %102 = vector.extract_strided_slice %100 {offsets = [0, 0], sizes = [8, 128], strides = [1, 1]} : vector<8x192xf32> to vector<8x128xf32>
    %103 = arith.addf %101, %102 : vector<8x128xf32>
    %104 = arith.negf %103 : vector<8x128xf32>
    %105 = math.exp %104 : vector<8x128xf32>
    %cst_17 = arith.constant 1.000000e+00 : f32
    %106 = vector.broadcast %cst_17 : f32 to vector<8x128xf32>
    %107 = arith.addf %106, %105 : vector<8x128xf32>
    %108 = arith.divf %106, %107 : vector<8x128xf32>
    %109 = vector.extract_strided_slice %108 {offsets = [0, 0], sizes = [8, 64], strides = [1, 1]} : vector<8x128xf32> to vector<8x64xf32>
    %110 = vector.extract_strided_slice %108 {offsets = [0, 64], sizes = [8, 64], strides = [1, 1]} : vector<8x128xf32> to vector<8x64xf32>
    %111 = vector.extract_strided_slice %97 {offsets = [0, 128], sizes = [8, 64], strides = [1, 1]} : vector<8x192xf32> to vector<8x64xf32>
    %112 = vector.extract_strided_slice %100 {offsets = [0, 128], sizes = [8, 64], strides = [1, 1]} : vector<8x192xf32> to vector<8x64xf32>
    %113 = arith.mulf %109, %112 : vector<8x64xf32>
    %114 = arith.addf %111, %113 : vector<8x64xf32>
    %115 = math.tanh %114 : vector<8x64xf32>
    %116 = arith.subf %96, %115 : vector<8x64xf32>
    %117 = arith.mulf %110, %116 : vector<8x64xf32>
    %118 = arith.addf %115, %117 : vector<8x64xf32>
    %119 = vector.extract_strided_slice %7 {offsets = [40, 0], sizes = [8, 192], strides = [1, 1]} : vector<64x192xf32> to vector<8x192xf32>
    %cst_18 = arith.constant dense<0.000000e+00> : vector<8x192xf32>
    %120 = tpu.matmul %118, %1, %cst_18 {dimension_numbers = #tpu.dot_dimension_numbers<[1], [0], [0], [1], [0, 0, 1, 1], [], []>} : vector<8x64xf32>, vector<64x192xf32>, vector<8x192xf32> -> vector<8x192xf32>
    %121 = vector.broadcast %3 : vector<1x192xf32> to vector<8x192xf32>
    %122 = arith.addf %120, %121 : vector<8x192xf32>
    %123 = vector.extract_strided_slice %119 {offsets = [0, 0], sizes = [8, 128], strides = [1, 1]} : vector<8x192xf32> to vector<8x128xf32>
    %124 = vector.extract_strided_slice %122 {offsets = [0, 0], sizes = [8, 128], strides = [1, 1]} : vector<8x192xf32> to vector<8x128xf32>
    %125 = arith.addf %123, %124 : vector<8x128xf32>
    %126 = arith.negf %125 : vector<8x128xf32>
    %127 = math.exp %126 : vector<8x128xf32>
    %cst_19 = arith.constant 1.000000e+00 : f32
    %128 = vector.broadcast %cst_19 : f32 to vector<8x128xf32>
    %129 = arith.addf %128, %127 : vector<8x128xf32>
    %130 = arith.divf %128, %129 : vector<8x128xf32>
    %131 = vector.extract_strided_slice %130 {offsets = [0, 0], sizes = [8, 64], strides = [1, 1]} : vector<8x128xf32> to vector<8x64xf32>
    %132 = vector.extract_strided_slice %130 {offsets = [0, 64], sizes = [8, 64], strides = [1, 1]} : vector<8x128xf32> to vector<8x64xf32>
    %133 = vector.extract_strided_slice %119 {offsets = [0, 128], sizes = [8, 64], strides = [1, 1]} : vector<8x192xf32> to vector<8x64xf32>
    %134 = vector.extract_strided_slice %122 {offsets = [0, 128], sizes = [8, 64], strides = [1, 1]} : vector<8x192xf32> to vector<8x64xf32>
    %135 = arith.mulf %131, %134 : vector<8x64xf32>
    %136 = arith.addf %133, %135 : vector<8x64xf32>
    %137 = math.tanh %136 : vector<8x64xf32>
    %138 = arith.subf %118, %137 : vector<8x64xf32>
    %139 = arith.mulf %132, %138 : vector<8x64xf32>
    %140 = arith.addf %137, %139 : vector<8x64xf32>
    %141 = vector.extract_strided_slice %7 {offsets = [48, 0], sizes = [8, 192], strides = [1, 1]} : vector<64x192xf32> to vector<8x192xf32>
    %cst_20 = arith.constant dense<0.000000e+00> : vector<8x192xf32>
    %142 = tpu.matmul %140, %1, %cst_20 {dimension_numbers = #tpu.dot_dimension_numbers<[1], [0], [0], [1], [0, 0, 1, 1], [], []>} : vector<8x64xf32>, vector<64x192xf32>, vector<8x192xf32> -> vector<8x192xf32>
    %143 = vector.broadcast %3 : vector<1x192xf32> to vector<8x192xf32>
    %144 = arith.addf %142, %143 : vector<8x192xf32>
    %145 = vector.extract_strided_slice %141 {offsets = [0, 0], sizes = [8, 128], strides = [1, 1]} : vector<8x192xf32> to vector<8x128xf32>
    %146 = vector.extract_strided_slice %144 {offsets = [0, 0], sizes = [8, 128], strides = [1, 1]} : vector<8x192xf32> to vector<8x128xf32>
    %147 = arith.addf %145, %146 : vector<8x128xf32>
    %148 = arith.negf %147 : vector<8x128xf32>
    %149 = math.exp %148 : vector<8x128xf32>
    %cst_21 = arith.constant 1.000000e+00 : f32
    %150 = vector.broadcast %cst_21 : f32 to vector<8x128xf32>
    %151 = arith.addf %150, %149 : vector<8x128xf32>
    %152 = arith.divf %150, %151 : vector<8x128xf32>
    %153 = vector.extract_strided_slice %152 {offsets = [0, 0], sizes = [8, 64], strides = [1, 1]} : vector<8x128xf32> to vector<8x64xf32>
    %154 = vector.extract_strided_slice %152 {offsets = [0, 64], sizes = [8, 64], strides = [1, 1]} : vector<8x128xf32> to vector<8x64xf32>
    %155 = vector.extract_strided_slice %141 {offsets = [0, 128], sizes = [8, 64], strides = [1, 1]} : vector<8x192xf32> to vector<8x64xf32>
    %156 = vector.extract_strided_slice %144 {offsets = [0, 128], sizes = [8, 64], strides = [1, 1]} : vector<8x192xf32> to vector<8x64xf32>
    %157 = arith.mulf %153, %156 : vector<8x64xf32>
    %158 = arith.addf %155, %157 : vector<8x64xf32>
    %159 = math.tanh %158 : vector<8x64xf32>
    %160 = arith.subf %140, %159 : vector<8x64xf32>
    %161 = arith.mulf %154, %160 : vector<8x64xf32>
    %162 = arith.addf %159, %161 : vector<8x64xf32>
    %163 = vector.extract_strided_slice %7 {offsets = [56, 0], sizes = [8, 192], strides = [1, 1]} : vector<64x192xf32> to vector<8x192xf32>
    %cst_22 = arith.constant dense<0.000000e+00> : vector<8x192xf32>
    %164 = tpu.matmul %162, %1, %cst_22 {dimension_numbers = #tpu.dot_dimension_numbers<[1], [0], [0], [1], [0, 0, 1, 1], [], []>} : vector<8x64xf32>, vector<64x192xf32>, vector<8x192xf32> -> vector<8x192xf32>
    %165 = vector.broadcast %3 : vector<1x192xf32> to vector<8x192xf32>
    %166 = arith.addf %164, %165 : vector<8x192xf32>
    %167 = vector.extract_strided_slice %163 {offsets = [0, 0], sizes = [8, 128], strides = [1, 1]} : vector<8x192xf32> to vector<8x128xf32>
    %168 = vector.extract_strided_slice %166 {offsets = [0, 0], sizes = [8, 128], strides = [1, 1]} : vector<8x192xf32> to vector<8x128xf32>
    %169 = arith.addf %167, %168 : vector<8x128xf32>
    %170 = arith.negf %169 : vector<8x128xf32>
    %171 = math.exp %170 : vector<8x128xf32>
    %cst_23 = arith.constant 1.000000e+00 : f32
    %172 = vector.broadcast %cst_23 : f32 to vector<8x128xf32>
    %173 = arith.addf %172, %171 : vector<8x128xf32>
    %174 = arith.divf %172, %173 : vector<8x128xf32>
    %175 = vector.extract_strided_slice %174 {offsets = [0, 0], sizes = [8, 64], strides = [1, 1]} : vector<8x128xf32> to vector<8x64xf32>
    %176 = vector.extract_strided_slice %174 {offsets = [0, 64], sizes = [8, 64], strides = [1, 1]} : vector<8x128xf32> to vector<8x64xf32>
    %177 = vector.extract_strided_slice %163 {offsets = [0, 128], sizes = [8, 64], strides = [1, 1]} : vector<8x192xf32> to vector<8x64xf32>
    %178 = vector.extract_strided_slice %166 {offsets = [0, 128], sizes = [8, 64], strides = [1, 1]} : vector<8x192xf32> to vector<8x64xf32>
    %179 = arith.mulf %175, %178 : vector<8x64xf32>
    %180 = arith.addf %177, %179 : vector<8x64xf32>
    %181 = math.tanh %180 : vector<8x64xf32>
    %182 = arith.subf %162, %181 : vector<8x64xf32>
    %183 = arith.mulf %176, %182 : vector<8x64xf32>
    %184 = arith.addf %181, %183 : vector<8x64xf32>
    %185 = tpu.concatenate %30, %52, %74, %96, %118, %140, %162, %184 in 0 : vector<8x64xf32>, vector<8x64xf32>, vector<8x64xf32>, vector<8x64xf32>, vector<8x64xf32>, vector<8x64xf32>, vector<8x64xf32>, vector<8x64xf32> -> vector<64x64xf32>
    %c0_24 = arith.constant 0 : index
    %c0_25 = arith.constant 0 : index
    %186 = vector.load %arg5[%c0_24, %c0_25] : memref<320x128xbf16, #tpu.memory_space<vmem>>, vector<64x32xbf16>
    %187 = arith.truncf %185 : vector<64x64xf32> to vector<64x64xbf16>
    %cst_26 = arith.constant dense<0.000000e+00> : vector<64x32xf32>
    %188 = tpu.matmul %187, %186, %cst_26 {dimension_numbers = #tpu.dot_dimension_numbers<[1], [0], [0], [1], [0, 0, 1, 1], [], []>} : vector<64x64xbf16>, vector<64x32xbf16>, vector<64x32xf32> -> vector<64x32xf32>
    %c4 = arith.constant 4 : index
    %c0_27 = arith.constant 0 : index
    %189 = vector.load %arg4[%c4, %c0_27] : memref<16x256xf32, #tpu.memory_space<vmem>>, vector<1x32xf32>
    %190 = vector.broadcast %189 : vector<1x32xf32> to vector<64x32xf32>
    %191 = arith.addf %188, %190 : vector<64x32xf32>
    %cst_28 = arith.constant 0.000000e+00 : f32
    %192 = vector.broadcast %cst_28 : f32 to vector<64x32xf32>
    %193 = arith.maximumf %191, %192 : vector<64x32xf32>
    %c0_29 = arith.constant 0 : index
    %c0_30 = arith.constant 0 : index
    %194 = vector.load %arg2[%c0_29, %c0_30] : memref<64x256xf32, #tpu.memory_space<vmem>>, vector<64x256xf32>
    %c2 = arith.constant 2 : index
    %c0_31 = arith.constant 0 : index
    %195 = vector.load %arg4[%c2, %c0_31] : memref<16x256xf32, #tpu.memory_space<vmem>>, vector<1x256xf32>
    %196 = vector.broadcast %195 : vector<1x256xf32> to vector<64x256xf32>
    %197 = arith.mulf %194, %196 : vector<64x256xf32>
    %c3 = arith.constant 3 : index
    %c0_32 = arith.constant 0 : index
    %198 = vector.load %arg4[%c3, %c0_32] : memref<16x256xf32, #tpu.memory_space<vmem>>, vector<1x256xf32>
    %199 = vector.broadcast %198 : vector<1x256xf32> to vector<64x256xf32>
    %200 = arith.addf %197, %199 : vector<64x256xf32>
    %cst_33 = arith.constant 0.000000e+00 : f32
    %201 = vector.broadcast %cst_33 : f32 to vector<64x256xf32>
    %202 = arith.maximumf %200, %201 : vector<64x256xf32>
    %c64 = arith.constant 64 : index
    %c0_34 = arith.constant 0 : index
    %203 = vector.load %arg5[%c64, %c0_34] : memref<320x128xbf16, #tpu.memory_space<vmem>>, vector<32x32xbf16>
    %c96 = arith.constant 96 : index
    %c0_35 = arith.constant 0 : index
    %204 = vector.load %arg5[%c96, %c0_35] : memref<320x128xbf16, #tpu.memory_space<vmem>>, vector<32x64xbf16>
    %c128 = arith.constant 128 : index
    %c0_36 = arith.constant 0 : index
    %205 = vector.load %arg5[%c128, %c0_36] : memref<320x128xbf16, #tpu.memory_space<vmem>>, vector<64x128xbf16>
    %c192 = arith.constant 192 : index
    %c0_37 = arith.constant 0 : index
    %206 = vector.load %arg5[%c192, %c0_37] : memref<320x128xbf16, #tpu.memory_space<vmem>>, vector<128x16xbf16>
    %207 = vector.extract_strided_slice %202 {offsets = [0, 0], sizes = [64, 32], strides = [1, 1]} : vector<64x256xf32> to vector<64x32xf32>
    %208 = arith.addf %207, %193 : vector<64x32xf32>
    %209 = arith.truncf %208 : vector<64x32xf32> to vector<64x32xbf16>
    %cst_38 = arith.constant dense<0.000000e+00> : vector<64x32xf32>
    %210 = tpu.matmul %209, %203, %cst_38 {dimension_numbers = #tpu.dot_dimension_numbers<[1], [0], [0], [1], [0, 0, 1, 1], [], []>} : vector<64x32xbf16>, vector<32x32xbf16>, vector<64x32xf32> -> vector<64x32xf32>
    %c5 = arith.constant 5 : index
    %c0_39 = arith.constant 0 : index
    %211 = vector.load %arg4[%c5, %c0_39] : memref<16x256xf32, #tpu.memory_space<vmem>>, vector<1x32xf32>
    %212 = vector.broadcast %211 : vector<1x32xf32> to vector<64x32xf32>
    %213 = arith.addf %210, %212 : vector<64x32xf32>
    %cst_40 = arith.constant 0.000000e+00 : f32
    %214 = vector.broadcast %cst_40 : f32 to vector<64x32xf32>
    %215 = arith.maximumf %213, %214 : vector<64x32xf32>
    %216 = vector.extract_strided_slice %202 {offsets = [0, 32], sizes = [64, 32], strides = [1, 1]} : vector<64x256xf32> to vector<64x32xf32>
    %217 = arith.addf %216, %215 : vector<64x32xf32>
    %218 = arith.truncf %217 : vector<64x32xf32> to vector<64x32xbf16>
    %cst_41 = arith.constant dense<0.000000e+00> : vector<64x64xf32>
    %219 = tpu.matmul %218, %204, %cst_41 {dimension_numbers = #tpu.dot_dimension_numbers<[1], [0], [0], [1], [0, 0, 1, 1], [], []>} : vector<64x32xbf16>, vector<32x64xbf16>, vector<64x64xf32> -> vector<64x64xf32>
    %c6 = arith.constant 6 : index
    %c0_42 = arith.constant 0 : index
    %220 = vector.load %arg4[%c6, %c0_42] : memref<16x256xf32, #tpu.memory_space<vmem>>, vector<1x64xf32>
    %221 = vector.broadcast %220 : vector<1x64xf32> to vector<64x64xf32>
    %222 = arith.addf %219, %221 : vector<64x64xf32>
    %cst_43 = arith.constant 0.000000e+00 : f32
    %223 = vector.broadcast %cst_43 : f32 to vector<64x64xf32>
    %224 = arith.maximumf %222, %223 : vector<64x64xf32>
    %225 = vector.extract_strided_slice %202 {offsets = [0, 64], sizes = [64, 64], strides = [1, 1]} : vector<64x256xf32> to vector<64x64xf32>
    %226 = arith.addf %225, %224 : vector<64x64xf32>
    %227 = arith.truncf %226 : vector<64x64xf32> to vector<64x64xbf16>
    %cst_44 = arith.constant dense<0.000000e+00> : vector<64x128xf32>
    %228 = tpu.matmul %227, %205, %cst_44 {dimension_numbers = #tpu.dot_dimension_numbers<[1], [0], [0], [1], [0, 0, 1, 1], [], []>} : vector<64x64xbf16>, vector<64x128xbf16>, vector<64x128xf32> -> vector<64x128xf32>
    %c7 = arith.constant 7 : index
    %c0_45 = arith.constant 0 : index
    %229 = vector.load %arg4[%c7, %c0_45] : memref<16x256xf32, #tpu.memory_space<vmem>>, vector<1x128xf32>
    %230 = vector.broadcast %229 : vector<1x128xf32> to vector<64x128xf32>
    %231 = arith.addf %228, %230 : vector<64x128xf32>
    %cst_46 = arith.constant 0.000000e+00 : f32
    %232 = vector.broadcast %cst_46 : f32 to vector<64x128xf32>
    %233 = arith.maximumf %231, %232 : vector<64x128xf32>
    %234 = vector.extract_strided_slice %202 {offsets = [0, 128], sizes = [64, 128], strides = [1, 1]} : vector<64x256xf32> to vector<64x128xf32>
    %235 = arith.addf %234, %233 : vector<64x128xf32>
    %236 = arith.truncf %235 : vector<64x128xf32> to vector<64x128xbf16>
    %cst_47 = arith.constant dense<0.000000e+00> : vector<64x16xf32>
    %237 = tpu.matmul %236, %206, %cst_47 {dimension_numbers = #tpu.dot_dimension_numbers<[1], [0], [0], [1], [0, 0, 1, 1], [], []>} : vector<64x128xbf16>, vector<128x16xbf16>, vector<64x16xf32> -> vector<64x16xf32>
    %c8 = arith.constant 8 : index
    %c0_48 = arith.constant 0 : index
    %238 = vector.load %arg4[%c8, %c0_48] : memref<16x256xf32, #tpu.memory_space<vmem>>, vector<1x16xf32>
    %239 = vector.broadcast %238 : vector<1x16xf32> to vector<64x16xf32>
    %240 = arith.addf %237, %239 : vector<64x16xf32>
    %241 = arith.negf %240 : vector<64x16xf32>
    %242 = math.exp %241 : vector<64x16xf32>
    %cst_49 = arith.constant 1.000000e+00 : f32
    %243 = vector.broadcast %cst_49 : f32 to vector<64x16xf32>
    %244 = arith.addf %243, %242 : vector<64x16xf32>
    %245 = arith.divf %243, %244 : vector<64x16xf32>
    %c0_50 = arith.constant 0 : index
    %c0_51 = arith.constant 0 : index
    %246 = vector.load %arg6[%c0_50, %c0_51] : memref<64x16xf32, #tpu.memory_space<vmem>>, vector<64x16xf32>
    tpu.vector_store %arg6[%c0_50, %c0_51], %245 {strides = array<i32>} : memref<64x16xf32, #tpu.memory_space<vmem>>, vector<64x16xf32>,
    return
  }
  func.func @transform_0(%arg0: i32) -> (i32, i32) {
    %c0_i32 = arith.constant 0 : i32
    %c0_i32_0 = arith.constant 0 : i32
    %c0_i32_1 = arith.constant 0 : i32
    return %c0_i32, %c0_i32_0 : i32, i32
  }
  func.func @transform_1(%arg0: i32) -> (i32, i32) {
    %c0_i32 = arith.constant 0 : i32
    %c0_i32_0 = arith.constant 0 : i32
    %c0_i32_1 = arith.constant 0 : i32
    return %c0_i32, %c0_i32_0 : i32, i32
  }
  func.func @transform_2(%arg0: i32) -> (i32, i32) {
    %c0_i32 = arith.constant 0 : i32
    %c0_i32_0 = arith.constant 0 : i32
    %c0_i32_1 = arith.constant 0 : i32
    return %c0_i32, %c0_i32_0 : i32, i32
  }
  func.func @transform_3(%arg0: i32) -> (i32, i32) {
    %c0_i32 = arith.constant 0 : i32
    %c0_i32_0 = arith.constant 0 : i32
    %c0_i32_1 = arith.constant 0 : i32
    return %c0_i32, %c0_i32_0 : i32, i32
  }
  func.func @transform_4(%arg0: i32) -> (i32, i32) {
    %c0_i32 = arith.constant 0 : i32
    %c0_i32_0 = arith.constant 0 : i32
    %c0_i32_1 = arith.constant 0 : i32
    return %c0_i32, %c0_i32_0 : i32, i32
  }
  func.func @transform_5(%arg0: i32) -> (i32, i32) {
    %c0_i32 = arith.constant 0 : i32
    %c0_i32_0 = arith.constant 0 : i32
    %c0_i32_1 = arith.constant 0 : i32
    return %c0_i32, %c0_i32_0 : i32, i32
  }
}

</mosaic_0001>

<llo_original>
// kernel: erb_decoder_forward.1
$region0: #{erb_decoder_forward.1}
  #allocation0 [shape = 'u32[]', space=smem, size = 0x4, offset = 0x4, fixed_abs, tag = 'smem constant byte address 0x4 - core index']
  #allocation1 [shape = 'u32[72,128]{1,0:T(1,128)}', space=vmem, size = 0x9000, scoped, tag = 'internal scratch']
  %s0 = inlined_call_operand.vmem [shape: f32[64,32], index: 0, kind: input, shape index: {}]
  %s1 = inlined_call_operand.vmem [shape: f32[64,256], index: 1, kind: input, shape index: {}]
  %s2 = inlined_call_operand.vmem [shape: f32[96,192], index: 2, kind: input, shape index: {}]
  %s3 = inlined_call_operand.vmem [shape: f32[16,256], index: 3, kind: input, shape index: {}]
  %s4 = inlined_call_operand.vmem [shape: bf16[320,128], index: 4, kind: input, shape index: {}]
  %s5 = inlined_call_operand.vmem [shape: f32[64,16], index: 5, kind: output, shape index: {}]
  %s6 = sld [smem:[#allocation0]]
  $region30: #{erb_decoder_forward.1} parent=0
    _
  %s8 = ssub.s32 1, %s6
  %s9 = scalar_select 0, %s8, %s6
  // Predicated region
  $region2: #{erb_decoder_forward.1} parent=0 // pred_check
    _
  $region3: #{erb_decoder_forward.1} parent=0 // pred_check_branch
    %11 = sbr.rel (0) target = $region5
  $region4: #{erb_decoder_forward.1} parent=0 // pred_region
    _
  $region5: #{erb_decoder_forward.1} parent=0 // pred_fallthru
    _
  // Predicated region
  $region6: #{erb_decoder_forward.1} parent=0 // pred_check
    _
  $region7: #{erb_decoder_forward.1} parent=0 // pred_check_branch
    %13 = sbr.rel (0) target = $region9
  $region8: #{erb_decoder_forward.1} parent=0 // pred_region
    _
  $region9: #{erb_decoder_forward.1} parent=0 // pred_fallthru
    _
  // Predicated region
  $region10: #{erb_decoder_forward.1} parent=0 // pred_check
    _
  $region11: #{erb_decoder_forward.1} parent=0 // pred_check_branch
    %15 = sbr.rel (0) target = $region13
  $region12: #{erb_decoder_forward.1} parent=0 // pred_region
    _
  $region13: #{erb_decoder_forward.1} parent=0 // pred_fallthru
    _
  // Predicated region
  $region14: #{erb_decoder_forward.1} parent=0 // pred_check
    _
  $region15: #{erb_decoder_forward.1} parent=0 // pred_check_branch
    %17 = sbr.rel (0) target = $region17
  $region16: #{erb_decoder_forward.1} parent=0 // pred_region
    _
  $region17: #{erb_decoder_forward.1} parent=0 // pred_fallthru
    _
  // Predicated region
  $region18: #{erb_decoder_forward.1} parent=0 // pred_check
    _
  $region19: #{erb_decoder_forward.1} parent=0 // pred_check_branch
    %19 = sbr.rel (0) target = $region21
  $region20: #{erb_decoder_forward.1} parent=0 // pred_region
    _
  $region21: #{erb_decoder_forward.1} parent=0 // pred_fallthru
    _
  %v21 = vld [vmem:[%s2] sm:$0xff]
  %v22 = vld [vmem:[%s2 + $0x8] sm:$0xff]
  %v23 = vld [vmem:[%s2 + $0x10] sm:$0xff]
  %v24 = vld [vmem:[%s2 + $0x18] sm:$0xff]
  %v25 = vld [vmem:[%s2 + $0x20] sm:$0xff]
  %v26 = vld [vmem:[%s2 + $0x28] sm:$0xff]
  %v27 = vld [vmem:[%s2 + $0x30] sm:$0xff]
  %v28 = vld [vmem:[%s2 + $0x38] sm:$0xff]
  %v29 = vld [vmem:[%s2 + $0x40] sm:$0xff]
  %v30 = vld [vmem:[%s2 + $0x48] sm:$0xff]
  %v31 = vld [vmem:[%s2 + $0x50] sm:$0xff]
  %v32 = vld [vmem:[%s2 + $0x58] sm:$0xff]
  %v33 = vld [vmem:[%s2 + $0x60] sm:$0xff]
  %v34 = vld [vmem:[%s2 + $0x68] sm:$0xff]
  %v35 = vld [vmem:[%s2 + $0x70] sm:$0xff]
  %v36 = vld [vmem:[%s2 + $0x78] sm:$0xff]
  %v37 = vld [vmem:[%s2 + $0x80] sm:$0xff]
  %v38 = vld [vmem:[%s2 + $0x88] sm:$0xff]
  %v39 = vld [vmem:[%s2 + $0x90] sm:$0xff]
  %v40 = vld [vmem:[%s2 + $0x98] sm:$0xff]
  %v41 = vld [vmem:[%s2 + $0xa0] sm:$0xff]
  %v42 = vld [vmem:[%s2 + $0xa8] sm:$0xff]
  %v43 = vld [vmem:[%s2 + $0xb0] sm:$0xff]
  %v44 = vld [vmem:[%s2 + $0xb8] sm:$0xff]
  %v45 = vld [vmem:[%s3] ss:$8 sm:$0x3]
  %s46 = scalar_lea.vmem %s3, 1
  %v47 = vld [vmem:[%s46] ss:$8 sm:$0x3]
  %v48 = vld [vmem:[%s0] sm:$0xff]
  %v49 = vld [vmem:[%s0 + $0x8] sm:$0xff]
  %v50 = vld [vmem:[%s0 + $0x10] sm:$0xff]
  %v51 = vld [vmem:[%s0 + $0x18] sm:$0xff]
  %v52 = vld [vmem:[%s0 + $0x20] sm:$0xff]
  %v53 = vld [vmem:[%s0 + $0x28] sm:$0xff]
  %v54 = vld [vmem:[%s0 + $0x30] sm:$0xff]
  %v55 = vld [vmem:[%s0 + $0x38] sm:$0xff]
  %v57 = vperm.slane %v45, 0
  %v58 = vperm.slane %v45, 1
  %vm61 = vcmask 261120
  %v63 = vsel %vm61, %v48, 0
  %v66 = vsel %vm61, %v49, 0
  %v69 = vsel %vm61, %v50, 0
  %v72 = vsel %vm61, %v51, 0
  %v75 = vsel %vm61, %v52, 0
  %v78 = vsel %vm61, %v53, 0
  %v81 = vsel %vm61, %v54, 0
  %v84 = vsel %vm61, %v55, 0
  %86 = vmatpush.msra.mxu0 0.0
  %87 = vmatpush.msra.mxu0 0.0
  %88 = vmatpush.msra.mxu0 0.0
  %89 = vmatpush.msra.mxu0 0.0
  %90 = vmatpush.msra.mxu0 0.0
  %91 = vmatpush.msra.mxu0 0.0
  %92 = vmatpush.msra.mxu0 0.0
  %93 = vmatpush.msra.mxu0 0.0
  %94 = vmatpush.msra.mxu0 0.0
  %95 = vmatpush.msra.mxu0 0.0
  %96 = vmatpush.msra.mxu0 0.0
  %97 = vmatpush.msra.mxu0 0.0
  %98 = vmatpush.msra.mxu0 %v27
  %99 = vmatpush.msra.mxu0 %v25
  %100 = vmatpush.msra.mxu0 %v23
  %101 = vmatpush.msra.mxu0 %v21
  %102 = vmatmul.f32.gmra.mxu0 %v63
  %v103 = vpop.f32.mrf.mxu0
  %v104 = vadd.f32 %v57, %v103
  %105 = vmatmul.f32.gmra.mxu0 %v66
  %v106 = vpop.f32.mrf.mxu0
  %v107 = vadd.f32 %v57, %v106
  %108 = vmatmul.f32.gmra.mxu0 %v69
  %v109 = vpop.f32.mrf.mxu0
  %v110 = vadd.f32 %v57, %v109
  %111 = vmatmul.f32.gmra.mxu0 %v72
  %v112 = vpop.f32.mrf.mxu0
  %v113 = vadd.f32 %v57, %v112
  %114 = vmatmul.f32.gmra.mxu0 %v75
  %v115 = vpop.f32.mrf.mxu0
  %v116 = vadd.f32 %v57, %v115
  %117 = vmatmul.f32.gmra.mxu0 %v78
  %v118 = vpop.f32.mrf.mxu0
  %v119 = vadd.f32 %v57, %v118
  %120 = vmatmul.f32.gmra.mxu0 %v81
  %v121 = vpop.f32.mrf.mxu0
  %v122 = vadd.f32 %v57, %v121
  %123 = vmatmul.f32.gmra.mxu0 %v84
  %v124 = vpop.f32.mrf.mxu0
  %v125 = vadd.f32 %v57, %v124
  %126 = vdwg.mxu0
  %127 = vmatpush.msra.mxu0 0.0
  %128 = vmatpush.msra.mxu0 0.0
  %129 = vmatpush.msra.mxu0 0.0
  %130 = vmatpush.msra.mxu0 0.0
  %131 = vmatpush.msra.mxu0 0.0
  %132 = vmatpush.msra.mxu0 0.0
  %133 = vmatpush.msra.mxu0 0.0
  %134 = vmatpush.msra.mxu0 0.0
  %135 = vmatpush.msra.mxu0 0.0
  %136 = vmatpush.msra.mxu0 0.0
  %137 = vmatpush.msra.mxu0 0.0
  %138 = vmatpush.msra.mxu0 0.0
  %139 = vmatpush.msra.mxu0 %v28
  %140 = vmatpush.msra.mxu0 %v26
  %141 = vmatpush.msra.mxu0 %v24
  %142 = vmatpush.msra.mxu0 %v22
  %143 = vmatmul.f32.gmra.mxu0 %v63
  %v144 = vpop.f32.mrf.mxu0
  %v145 = vadd.f32 %v58, %v144
  %146 = vmatmul.f32.gmra.mxu0 %v66
  %v147 = vpop.f32.mrf.mxu0
  %v148 = vadd.f32 %v58, %v147
  %149 = vmatmul.f32.gmra.mxu0 %v69
  %v150 = vpop.f32.mrf.mxu0
  %v151 = vadd.f32 %v58, %v150
  %152 = vmatmul.f32.gmra.mxu0 %v72
  %v153 = vpop.f32.mrf.mxu0
  %v154 = vadd.f32 %v58, %v153
  %155 = vmatmul.f32.gmra.mxu0 %v75
  %v156 = vpop.f32.mrf.mxu0
  %v157 = vadd.f32 %v58, %v156
  %158 = vmatmul.f32.gmra.mxu0 %v78
  %v159 = vpop.f32.mrf.mxu0
  %v160 = vadd.f32 %v58, %v159
  %161 = vmatmul.f32.gmra.mxu0 %v81
  %v162 = vpop.f32.mrf.mxu0
  %v163 = vadd.f32 %v58, %v162
  %164 = vmatmul.f32.gmra.mxu0 %v84
  %v165 = vpop.f32.mrf.mxu0
  %v166 = vadd.f32 %v58, %v165
  %167 = vdwg.mxu0
  %v169 = vperm.slane %v47, 0
  %v170 = vperm.slane %v47, 1
  %vm173 = vcmask 523264
  %v175 = vsel %vm173, 0.0, 0
  %177 = vmatpush.msra.mxu0 0.0
  %178 = vmatpush.msra.mxu0 0.0
  %179 = vmatpush.msra.mxu0 0.0
  %180 = vmatpush.msra.mxu0 0.0
  %181 = vmatpush.msra.mxu0 0.0
  %182 = vmatpush.msra.mxu0 0.0
  %183 = vmatpush.msra.mxu0 0.0
  %184 = vmatpush.msra.mxu0 0.0
  %185 = vmatpush.msra.mxu0 %v43
  %186 = vmatpush.msra.mxu0 %v41
  %187 = vmatpush.msra.mxu0 %v39
  %188 = vmatpush.msra.mxu0 %v37
  %189 = vmatpush.msra.mxu0 %v35
  %190 = vmatpush.msra.mxu0 %v33
  %191 = vmatpush.msra.mxu0 %v31
  %192 = vmatpush.msra.mxu0 %v29
  %193 = vmatmul.f32.gmra.mxu0 %v175
  %v194 = vpop.f32.mrf.mxu0
  %v195 = vadd.f32 %v169, %v194
  %196 = vdwg.mxu0
  %197 = vmatpush.msra.mxu0 0.0
  %198 = vmatpush.msra.mxu0 0.0
  %199 = vmatpush.msra.mxu0 0.0
  %200 = vmatpush.msra.mxu0 0.0
  %201 = vmatpush.msra.mxu0 0.0
  %202 = vmatpush.msra.mxu0 0.0
  %203 = vmatpush.msra.mxu0 0.0
  %204 = vmatpush.msra.mxu0 0.0
  %205 = vmatpush.msra.mxu0 %v44
  %206 = vmatpush.msra.mxu0 %v42
  %207 = vmatpush.msra.mxu0 %v40
  %208 = vmatpush.msra.mxu0 %v38
  %209 = vmatpush.msra.mxu0 %v36
  %210 = vmatpush.msra.mxu0 %v34
  %211 = vmatpush.msra.mxu0 %v32
  %212 = vmatpush.msra.mxu0 %v30
  %213 = vmatmul.f32.gmra.mxu0 %v175
  %v214 = vpop.f32.mrf.mxu0
  %v215 = vadd.f32 %v170, %v214
  %216 = vdwg.mxu0
  %v217 = vadd.f32 %v104, %v195
  %v218 = vxor.u32 %v217, 2147483648
  %v219 = vmul.f32 %v218, 1.442695
  %v220 = vpow.pop %v219
  %v221 = vadd.f32 %v220, 1.0
  %v222 = vrcp.pop %v221
  %v223 = vmul.f32 %v221, %v222
  %v224 = vsub.f32 1.0, %v223
  %v225 = vmul.f32 %v222, %v224
  %v226 = vadd.f32 %v222, %v225
  %vm227 = vweird.f32 %v221
  %vm228 = vweird.f32 %v222
  %vm229 = vmor %vm227, %vm228
  %v230 = vsel %vm229, %v222, %v226
  %v231 = vand.u32 2147483647, %v221
  %vm232 = vcmp.eq.f32.partialorder %v231, 8.507059e+37
  %v233 = vand.u32 %v221, 2147483648
  %v234 = vor.u32 1.1754944e-38, %v233
  %v235 = vsel %vm232, %v234, %v230
  %v236 = vmul.f32 1.0, %v235
  %v237 = vmul.f32 %v236, %v215
  %v238 = vadd.f32 %v145, %v237
  %v239 = vtanh.pop %v238
  %v240 = vsub.f32 0.0, %v239
  %242 = vrot.lane.b32.xlu0 %v240, 64
  %v243 = vpop.permute.xlu0 %242
  %v245 = vmul.f32 %v236, %v243
  %247 = vrot.lane.b32.xlu0 %v245, 64
  %v248 = vpop.permute.xlu0 %247
  %v250 = vadd.f32 %v239, %v248
  %v252 = vsel %vm173, %v250, 0
  %254 = vmatpush.msra.mxu0 0.0
  %255 = vmatpush.msra.mxu0 0.0
  %256 = vmatpush.msra.mxu0 0.0
  %257 = vmatpush.msra.mxu0 0.0
  %258 = vmatpush.msra.mxu0 0.0
  %259 = vmatpush.msra.mxu0 0.0
  %260 = vmatpush.msra.mxu0 0.0
  %261 = vmatpush.msra.mxu0 0.0
  %262 = vmatpush.msra.mxu0 %v43
  %263 = vmatpush.msra.mxu0 %v41
  %264 = vmatpush.msra.mxu0 %v39
  %265 = vmatpush.msra.mxu0 %v37
  %266 = vmatpush.msra.mxu0 %v35
  %267 = vmatpush.msra.mxu0 %v33
  %268 = vmatpush.msra.mxu0 %v31
  %269 = vmatpush.msra.mxu0 %v29
  %270 = vmatmul.f32.gmra.mxu0 %v252
  %v271 = vpop.f32.mrf.mxu0
  %v272 = vadd.f32 %v169, %v271
  %273 = vdwg.mxu0
  %274 = vmatpush.msra.mxu0 0.0
  %275 = vmatpush.msra.mxu0 0.0
  %276 = vmatpush.msra.mxu0 0.0
  %277 = vmatpush.msra.mxu0 0.0
  %278 = vmatpush.msra.mxu0 0.0
  %279 = vmatpush.msra.mxu0 0.0
  %280 = vmatpush.msra.mxu0 0.0
  %281 = vmatpush.msra.mxu0 0.0
  %282 = vmatpush.msra.mxu0 %v44
  %283 = vmatpush.msra.mxu0 %v42
  %284 = vmatpush.msra.mxu0 %v40
  %285 = vmatpush.msra.mxu0 %v38
  %286 = vmatpush.msra.mxu0 %v36
  %287 = vmatpush.msra.mxu0 %v34
  %288 = vmatpush.msra.mxu0 %v32
  %289 = vmatpush.msra.mxu0 %v30
  %290 = vmatmul.f32.gmra.mxu0 %v252
  %v291 = vpop.f32.mrf.mxu0
  %v292 = vadd.f32 %v170, %v291
  %293 = vdwg.mxu0
  %v294 = vadd.f32 %v107, %v272
  %v295 = vxor.u32 %v294, 2147483648
  %v296 = vmul.f32 %v295, 1.442695
  %v297 = vpow.pop %v296
  %v298 = vadd.f32 %v297, 1.0
  %v299 = vrcp.pop %v298
  %v300 = vmul.f32 %v298, %v299
  %v301 = vsub.f32 1.0, %v300
  %v302 = vmul.f32 %v299, %v301
  %v303 = vadd.f32 %v299, %v302
  %vm304 = vweird.f32 %v298
  %vm305 = vweird.f32 %v299
  %vm306 = vmor %vm304, %vm305
  %v307 = vsel %vm306, %v299, %v303
  %v308 = vand.u32 2147483647, %v298
  %vm309 = vcmp.eq.f32.partialorder %v308, 8.507059e+37
  %v310 = vand.u32 %v298, 2147483648
  %v311 = vor.u32 1.1754944e-38, %v310
  %v312 = vsel %vm309, %v311, %v307
  %v313 = vmul.f32 1.0, %v312
  %v314 = vmul.f32 %v313, %v292
  %v315 = vadd.f32 %v148, %v314
  %v316 = vtanh.pop %v315
  %v317 = vsub.f32 %v250, %v316
  %319 = vrot.lane.b32.xlu0 %v317, 64
  %v320 = vpop.permute.xlu0 %319
  %v322 = vmul.f32 %v313, %v320
  %324 = vrot.lane.b32.xlu0 %v322, 64
  %v325 = vpop.permute.xlu0 %324
  %v327 = vadd.f32 %v316, %v325
  %v329 = vsel %vm173, %v327, 0
  %331 = vmatpush.msra.mxu0 0.0
  %332 = vmatpush.msra.mxu0 0.0
  %333 = vmatpush.msra.mxu0 0.0
  %334 = vmatpush.msra.mxu0 0.0
  %335 = vmatpush.msra.mxu0 0.0
  %336 = vmatpush.msra.mxu0 0.0
  %337 = vmatpush.msra.mxu0 0.0
  %338 = vmatpush.msra.mxu0 0.0
  %339 = vmatpush.msra.mxu0 %v43
  %340 = vmatpush.msra.mxu0 %v41
  %341 = vmatpush.msra.mxu0 %v39
  %342 = vmatpush.msra.mxu0 %v37
  %343 = vmatpush.msra.mxu0 %v35
  %344 = vmatpush.msra.mxu0 %v33
  %345 = vmatpush.msra.mxu0 %v31
  %346 = vmatpush.msra.mxu0 %v29
  %347 = vmatmul.f32.gmra.mxu0 %v329
  %v348 = vpop.f32.mrf.mxu0
  %v349 = vadd.f32 %v169, %v348
  %350 = vdwg.mxu0
  %351 = vmatpush.msra.mxu0 0.0
  %352 = vmatpush.msra.mxu0 0.0
  %353 = vmatpush.msra.mxu0 0.0
  %354 = vmatpush.msra.mxu0 0.0
  %355 = vmatpush.msra.mxu0 0.0
  %356 = vmatpush.msra.mxu0 0.0
  %357 = vmatpush.msra.mxu0 0.0
  %358 = vmatpush.msra.mxu0 0.0
  %359 = vmatpush.msra.mxu0 %v44
  %360 = vmatpush.msra.mxu0 %v42
  %361 = vmatpush.msra.mxu0 %v40
  %362 = vmatpush.msra.mxu0 %v38
  %363 = vmatpush.msra.mxu0 %v36
  %364 = vmatpush.msra.mxu0 %v34
  %365 = vmatpush.msra.mxu0 %v32
  %366 = vmatpush.msra.mxu0 %v30
  %367 = vmatmul.f32.gmra.mxu0 %v329
  %v368 = vpop.f32.mrf.mxu0
  %v369 = vadd.f32 %v170, %v368
  %370 = vdwg.mxu0
  %v371 = vadd.f32 %v110, %v349
  %v372 = vxor.u32 %v371, 2147483648
  %v373 = vmul.f32 %v372, 1.442695
  %v374 = vpow.pop %v373
  %v375 = vadd.f32 %v374, 1.0
  %v376 = vrcp.pop %v375
  %v377 = vmul.f32 %v375, %v376
  %v378 = vsub.f32 1.0, %v377
  %v379 = vmul.f32 %v376, %v378
  %v380 = vadd.f32 %v376, %v379
  %vm381 = vweird.f32 %v375
  %vm382 = vweird.f32 %v376
  %vm383 = vmor %vm381, %vm382
  %v384 = vsel %vm383, %v376, %v380
  %v385 = vand.u32 2147483647, %v375
  %vm386 = vcmp.eq.f32.partialorder %v385, 8.507059e+37
  %v387 = vand.u32 %v375, 2147483648
  %v388 = vor.u32 1.1754944e-38, %v387
  %v389 = vsel %vm386, %v388, %v384
  %v390 = vmul.f32 1.0, %v389
  %v391 = vmul.f32 %v390, %v369
  %v392 = vadd.f32 %v151, %v391
  %v393 = vtanh.pop %v392
  %v394 = vsub.f32 %v327, %v393
  %396 = vrot.lane.b32.xlu0 %v394, 64
  %v397 = vpop.permute.xlu0 %396
  %v399 = vmul.f32 %v390, %v397
  %401 = vrot.lane.b32.xlu0 %v399, 64
  %v402 = vpop.permute.xlu0 %401
  %v404 = vadd.f32 %v393, %v402
  %v406 = vsel %vm173, %v404, 0
  %408 = vmatpush.msra.mxu0 0.0
  %409 = vmatpush.msra.mxu0 0.0
  %410 = vmatpush.msra.mxu0 0.0
  %411 = vmatpush.msra.mxu0 0.0
  %412 = vmatpush.msra.mxu0 0.0
  %413 = vmatpush.msra.mxu0 0.0
  %414 = vmatpush.msra.mxu0 0.0
  %415 = vmatpush.msra.mxu0 0.0
  %416 = vmatpush.msra.mxu0 %v43
  %417 = vmatpush.msra.mxu0 %v41
  %418 = vmatpush.msra.mxu0 %v39
  %419 = vmatpush.msra.mxu0 %v37
  %420 = vmatpush.msra.mxu0 %v35
  %421 = vmatpush.msra.mxu0 %v33
  %422 = vmatpush.msra.mxu0 %v31
  %423 = vmatpush.msra.mxu0 %v29
  %424 = vmatmul.f32.gmra.mxu0 %v406
  %v425 = vpop.f32.mrf.mxu0
  %v426 = vadd.f32 %v169, %v425
  %427 = vdwg.mxu0
  %428 = vmatpush.msra.mxu0 0.0
  %429 = vmatpush.msra.mxu0 0.0
  %430 = vmatpush.msra.mxu0 0.0
  %431 = vmatpush.msra.mxu0 0.0
  %432 = vmatpush.msra.mxu0 0.0
  %433 = vmatpush.msra.mxu0 0.0
  %434 = vmatpush.msra.mxu0 0.0
  %435 = vmatpush.msra.mxu0 0.0
  %436 = vmatpush.msra.mxu0 %v44
  %437 = vmatpush.msra.mxu0 %v42
  %438 = vmatpush.msra.mxu0 %v40
  %439 = vmatpush.msra.mxu0 %v38
  %440 = vmatpush.msra.mxu0 %v36
  %441 = vmatpush.msra.mxu0 %v34
  %442 = vmatpush.msra.mxu0 %v32
  %443 = vmatpush.msra.mxu0 %v30
  %444 = vmatmul.f32.gmra.mxu0 %v406
  %v445 = vpop.f32.mrf.mxu0
  %v446 = vadd.f32 %v170, %v445
  %447 = vdwg.mxu0
  %v448 = vadd.f32 %v113, %v426
  %v449 = vxor.u32 %v448, 2147483648
  %v450 = vmul.f32 %v449, 1.442695
  %v451 = vpow.pop %v450
  %v452 = vadd.f32 %v451, 1.0
  %v453 = vrcp.pop %v452
  %v454 = vmul.f32 %v452, %v453
  %v455 = vsub.f32 1.0, %v454
  %v456 = vmul.f32 %v453, %v455
  %v457 = vadd.f32 %v453, %v456
  %vm458 = vweird.f32 %v452
  %vm459 = vweird.f32 %v453
  %vm460 = vmor %vm458, %vm459
  %v461 = vsel %vm460, %v453, %v457
  %v462 = vand.u32 2147483647, %v452
  %vm463 = vcmp.eq.f32.partialorder %v462, 8.507059e+37
  %v464 = vand.u32 %v452, 2147483648
  %v465 = vor.u32 1.1754944e-38, %v464
  %v466 = vsel %vm463, %v465, %v461
  %v467 = vmul.f32 1.0, %v466
  %v468 = vmul.f32 %v467, %v446
  %v469 = vadd.f32 %v154, %v468
  %v470 = vtanh.pop %v469
  %v471 = vsub.f32 %v404, %v470
  %473 = vrot.lane.b32.xlu0 %v471, 64
  %v474 = vpop.permute.xlu0 %473
  %v476 = vmul.f32 %v467, %v474
  %478 = vrot.lane.b32.xlu0 %v476, 64
  %v479 = vpop.permute.xlu0 %478
  %v481 = vadd.f32 %v470, %v479
  %v483 = vsel %vm173, %v481, 0
  %485 = vmatpush.msra.mxu0 0.0
  %486 = vmatpush.msra.mxu0 0.0
  %487 = vmatpush.msra.mxu0 0.0
  %488 = vmatpush.msra.mxu0 0.0
  %489 = vmatpush.msra.mxu0 0.0
  %490 = vmatpush.msra.mxu0 0.0
  %491 = vmatpush.msra.mxu0 0.0
  %492 = vmatpush.msra.mxu0 0.0
  %493 = vmatpush.msra.mxu0 %v43
  %494 = vmatpush.msra.mxu0 %v41
  %495 = vmatpush.msra.mxu0 %v39
  %496 = vmatpush.msra.mxu0 %v37
  %497 = vmatpush.msra.mxu0 %v35
  %498 = vmatpush.msra.mxu0 %v33
  %499 = vmatpush.msra.mxu0 %v31
  %500 = vmatpush.msra.mxu0 %v29
  %501 = vmatmul.f32.gmra.mxu0 %v483
  %v502 = vpop.f32.mrf.mxu0
  %v503 = vadd.f32 %v169, %v502
  %504 = vdwg.mxu0
  %505 = vmatpush.msra.mxu0 0.0
  %506 = vmatpush.msra.mxu0 0.0
  %507 = vmatpush.msra.mxu0 0.0
  %508 = vmatpush.msra.mxu0 0.0
  %509 = vmatpush.msra.mxu0 0.0
  %510 = vmatpush.msra.mxu0 0.0
  %511 = vmatpush.msra.mxu0 0.0
  %512 = vmatpush.msra.mxu0 0.0
  %513 = vmatpush.msra.mxu0 %v44
  %514 = vmatpush.msra.mxu0 %v42
  %515 = vmatpush.msra.mxu0 %v40
  %516 = vmatpush.msra.mxu0 %v38
  %517 = vmatpush.msra.mxu0 %v36
  %518 = vmatpush.msra.mxu0 %v34
  %519 = vmatpush.msra.mxu0 %v32
  %520 = vmatpush.msra.mxu0 %v30
  %521 = vmatmul.f32.gmra.mxu0 %v483
  %v522 = vpop.f32.mrf.mxu0
  %v523 = vadd.f32 %v170, %v522
  %524 = vdwg.mxu0
  %v525 = vadd.f32 %v116, %v503
  %v526 = vxor.u32 %v525, 2147483648
  %v527 = vmul.f32 %v526, 1.442695
  %v528 = vpow.pop %v527
  %v529 = vadd.f32 %v528, 1.0
  %v530 = vrcp.pop %v529
  %v531 = vmul.f32 %v529, %v530
  %v532 = vsub.f32 1.0, %v531
  %v533 = vmul.f32 %v530, %v532
  %v534 = vadd.f32 %v530, %v533
  %vm535 = vweird.f32 %v529
  %vm536 = vweird.f32 %v530
  %vm537 = vmor %vm535, %vm536
  %v538 = vsel %vm537, %v530, %v534
  %v539 = vand.u32 2147483647, %v529
  %vm540 = vcmp.eq.f32.partialorder %v539, 8.507059e+37
  %v541 = vand.u32 %v529, 2147483648
  %v542 = vor.u32 1.1754944e-38, %v541
  %v543 = vsel %vm540, %v542, %v538
  %v544 = vmul.f32 1.0, %v543
  %v545 = vmul.f32 %v544, %v523
  %v546 = vadd.f32 %v157, %v545
  %v547 = vtanh.pop %v546
  %v548 = vsub.f32 %v481, %v547
  %550 = vrot.lane.b32.xlu0 %v548, 64
  %v551 = vpop.permute.xlu0 %550
  %v553 = vmul.f32 %v544, %v551
  %555 = vrot.lane.b32.xlu0 %v553, 64
  %v556 = vpop.permute.xlu0 %555
  %v558 = vadd.f32 %v547, %v556
  %v560 = vsel %vm173, %v558, 0
  %562 = vmatpush.msra.mxu0 0.0
  %563 = vmatpush.msra.mxu0 0.0
  %564 = vmatpush.msra.mxu0 0.0
  %565 = vmatpush.msra.mxu0 0.0
  %566 = vmatpush.msra.mxu0 0.0
  %567 = vmatpush.msra.mxu0 0.0
  %568 = vmatpush.msra.mxu0 0.0
  %569 = vmatpush.msra.mxu0 0.0
  %570 = vmatpush.msra.mxu0 %v43
  %571 = vmatpush.msra.mxu0 %v41
  %572 = vmatpush.msra.mxu0 %v39
  %573 = vmatpush.msra.mxu0 %v37
  %574 = vmatpush.msra.mxu0 %v35
  %575 = vmatpush.msra.mxu0 %v33
  %576 = vmatpush.msra.mxu0 %v31
  %577 = vmatpush.msra.mxu0 %v29
  %578 = vmatmul.f32.gmra.mxu0 %v560
  %v579 = vpop.f32.mrf.mxu0
  %v580 = vadd.f32 %v169, %v579
  %581 = vdwg.mxu0
  %582 = vmatpush.msra.mxu0 0.0
  %583 = vmatpush.msra.mxu0 0.0
  %584 = vmatpush.msra.mxu0 0.0
  %585 = vmatpush.msra.mxu0 0.0
  %586 = vmatpush.msra.mxu0 0.0
  %587 = vmatpush.msra.mxu0 0.0
  %588 = vmatpush.msra.mxu0 0.0
  %589 = vmatpush.msra.mxu0 0.0
  %590 = vmatpush.msra.mxu0 %v44
  %591 = vmatpush.msra.mxu0 %v42
  %592 = vmatpush.msra.mxu0 %v40
  %593 = vmatpush.msra.mxu0 %v38
  %594 = vmatpush.msra.mxu0 %v36
  %595 = vmatpush.msra.mxu0 %v34
  %596 = vmatpush.msra.mxu0 %v32
  %597 = vmatpush.msra.mxu0 %v30
  %598 = vmatmul.f32.gmra.mxu0 %v560
  %v599 = vpop.f32.mrf.mxu0
  %v600 = vadd.f32 %v170, %v599
  %601 = vdwg.mxu0
  %v602 = vadd.f32 %v119, %v580
  %v603 = vxor.u32 %v602, 2147483648
  %v604 = vmul.f32 %v603, 1.442695
  %v605 = vpow.pop %v604
  %v606 = vadd.f32 %v605, 1.0
  %v607 = vrcp.pop %v606
  %v608 = vmul.f32 %v606, %v607
  %v609 = vsub.f32 1.0, %v608
  %v610 = vmul.f32 %v607, %v609
  %v611 = vadd.f32 %v607, %v610
  %vm612 = vweird.f32 %v606
  %vm613 = vweird.f32 %v607
  %vm614 = vmor %vm612, %vm613
  %v615 = vsel %vm614, %v607, %v611
  %v616 = vand.u32 2147483647, %v606
  %vm617 = vcmp.eq.f32.partialorder %v616, 8.507059e+37
  %v618 = vand.u32 %v606, 2147483648
  %v619 = vor.u32 1.1754944e-38, %v618
  %v620 = vsel %vm617, %v619, %v615
  %v621 = vmul.f32 1.0, %v620
  %v622 = vmul.f32 %v621, %v600
  %v623 = vadd.f32 %v160, %v622
  %v624 = vtanh.pop %v623
  %v625 = vsub.f32 %v558, %v624
  %627 = vrot.lane.b32.xlu0 %v625, 64
  %v628 = vpop.permute.xlu0 %627
  %v630 = vmul.f32 %v621, %v628
  %632 = vrot.lane.b32.xlu0 %v630, 64
  %v633 = vpop.permute.xlu0 %632
  %v635 = vadd.f32 %v624, %v633
  %v637 = vsel %vm173, %v635, 0
  %639 = vmatpush.msra.mxu0 0.0
  %640 = vmatpush.msra.mxu0 0.0
  %641 = vmatpush.msra.mxu0 0.0
  %642 = vmatpush.msra.mxu0 0.0
  %643 = vmatpush.msra.mxu0 0.0
  %644 = vmatpush.msra.mxu0 0.0
  %645 = vmatpush.msra.mxu0 0.0
  %646 = vmatpush.msra.mxu0 0.0
  %647 = vmatpush.msra.mxu0 %v43
  %648 = vmatpush.msra.mxu0 %v41
  %649 = vmatpush.msra.mxu0 %v39
  %650 = vmatpush.msra.mxu0 %v37
  %651 = vmatpush.msra.mxu0 %v35
  %652 = vmatpush.msra.mxu0 %v33
  %653 = vmatpush.msra.mxu0 %v31
  %654 = vmatpush.msra.mxu0 %v29
  %655 = vmatmul.f32.gmra.mxu0 %v637
  %v656 = vpop.f32.mrf.mxu0
  %v657 = vadd.f32 %v169, %v656
  %658 = vdwg.mxu0
  %659 = vmatpush.msra.mxu0 0.0
  %660 = vmatpush.msra.mxu0 0.0
  %661 = vmatpush.msra.mxu0 0.0
  %662 = vmatpush.msra.mxu0 0.0
  %663 = vmatpush.msra.mxu0 0.0
  %664 = vmatpush.msra.mxu0 0.0
  %665 = vmatpush.msra.mxu0 0.0
  %666 = vmatpush.msra.mxu0 0.0
  %667 = vmatpush.msra.mxu0 %v44
  %668 = vmatpush.msra.mxu0 %v42
  %669 = vmatpush.msra.mxu0 %v40
  %670 = vmatpush.msra.mxu0 %v38
  %671 = vmatpush.msra.mxu0 %v36
  %672 = vmatpush.msra.mxu0 %v34
  %673 = vmatpush.msra.mxu0 %v32
  %674 = vmatpush.msra.mxu0 %v30
  %675 = vmatmul.f32.gmra.mxu0 %v637
  %v676 = vpop.f32.mrf.mxu0
  %v677 = vadd.f32 %v170, %v676
  %678 = vdwg.mxu0
  %v679 = vadd.f32 %v122, %v657
  %v680 = vxor.u32 %v679, 2147483648
  %v681 = vmul.f32 %v680, 1.442695
  %v682 = vpow.pop %v681
  %v683 = vadd.f32 %v682, 1.0
  %v684 = vrcp.pop %v683
  %v685 = vmul.f32 %v683, %v684
  %v686 = vsub.f32 1.0, %v685
  %v687 = vmul.f32 %v684, %v686
  %v688 = vadd.f32 %v684, %v687
  %vm689 = vweird.f32 %v683
  %vm690 = vweird.f32 %v684
  %vm691 = vmor %vm689, %vm690
  %v692 = vsel %vm691, %v684, %v688
  %v693 = vand.u32 2147483647, %v683
  %vm694 = vcmp.eq.f32.partialorder %v693, 8.507059e+37
  %v695 = vand.u32 %v683, 2147483648
  %v696 = vor.u32 1.1754944e-38, %v695
  %v697 = vsel %vm694, %v696, %v692
  %v698 = vmul.f32 1.0, %v697
  %v699 = vmul.f32 %v698, %v677
  %v700 = vadd.f32 %v163, %v699
  %v701 = vtanh.pop %v700
  %v702 = vsub.f32 %v635, %v701
  %704 = vrot.lane.b32.xlu0 %v702, 64
  %v705 = vpop.permute.xlu0 %704
  %v707 = vmul.f32 %v698, %v705
  %709 = vrot.lane.b32.xlu0 %v707, 64
  %v710 = vpop.permute.xlu0 %709
  %v712 = vadd.f32 %v701, %v710
  %v714 = vsel %vm173, %v712, 0
  %716 = vmatpush.msra.mxu0 0.0
  %717 = vmatpush.msra.mxu0 0.0
  %718 = vmatpush.msra.mxu0 0.0
  %719 = vmatpush.msra.mxu0 0.0
  %720 = vmatpush.msra.mxu0 0.0
  %721 = vmatpush.msra.mxu0 0.0
  %722 = vmatpush.msra.mxu0 0.0
  %723 = vmatpush.msra.mxu0 0.0
  %724 = vmatpush.msra.mxu0 %v43
  %725 = vmatpush.msra.mxu0 %v41
  %726 = vmatpush.msra.mxu0 %v39
  %727 = vmatpush.msra.mxu0 %v37
  %728 = vmatpush.msra.mxu0 %v35
  %729 = vmatpush.msra.mxu0 %v33
  %730 = vmatpush.msra.mxu0 %v31
  %731 = vmatpush.msra.mxu0 %v29
  %732 = vmatmul.f32.gmra.mxu0 %v714
  %v733 = vpop.f32.mrf.mxu0
  %v734 = vadd.f32 %v169, %v733
  %735 = vdwg.mxu0
  %736 = vmatpush.msra.mxu0 0.0
  %737 = vmatpush.msra.mxu0 0.0
  %738 = vmatpush.msra.mxu0 0.0
  %739 = vmatpush.msra.mxu0 0.0
  %740 = vmatpush.msra.mxu0 0.0
  %741 = vmatpush.msra.mxu0 0.0
  %742 = vmatpush.msra.mxu0 0.0
  %743 = vmatpush.msra.mxu0 0.0
  %744 = vmatpush.msra.mxu0 %v44
  %745 = vmatpush.msra.mxu0 %v42
  %746 = vmatpush.msra.mxu0 %v40
  %747 = vmatpush.msra.mxu0 %v38
  %748 = vmatpush.msra.mxu0 %v36
  %749 = vmatpush.msra.mxu0 %v34
  %750 = vmatpush.msra.mxu0 %v32
  %751 = vmatpush.msra.mxu0 %v30
  %752 = vmatmul.f32.gmra.mxu0 %v714
  %v753 = vpop.f32.mrf.mxu0
  %v754 = vadd.f32 %v170, %v753
  %755 = vdwg.mxu0
  %v756 = vadd.f32 %v125, %v734
  %v757 = vxor.u32 %v756, 2147483648
  %v758 = vmul.f32 %v757, 1.442695
  %v759 = vpow.pop %v758
  %v760 = vadd.f32 %v759, 1.0
  %v761 = vrcp.pop %v760
  %v762 = vmul.f32 %v760, %v761
  %v763 = vsub.f32 1.0, %v762
  %v764 = vmul.f32 %v761, %v763
  %v765 = vadd.f32 %v761, %v764
  %vm766 = vweird.f32 %v760
  %vm767 = vweird.f32 %v761
  %vm768 = vmor %vm766, %vm767
  %v769 = vsel %vm768, %v761, %v765
  %v770 = vand.u32 2147483647, %v760
  %vm771 = vcmp.eq.f32.partialorder %v770, 8.507059e+37
  %v772 = vand.u32 %v760, 2147483648
  %v773 = vor.u32 1.1754944e-38, %v772
  %v774 = vsel %vm771, %v773, %v769
  %v775 = vmul.f32 1.0, %v774
  %v776 = vmul.f32 %v775, %v754
  %v777 = vadd.f32 %v166, %v776
  %v778 = vtanh.pop %v777
  %v779 = vsub.f32 %v712, %v778
  %781 = vrot.lane.b32.xlu0 %v779, 64
  %v782 = vpop.permute.xlu0 %781
  %v784 = vmul.f32 %v775, %v782
  %786 = vrot.lane.b32.xlu0 %v784, 64
  %v787 = vpop.permute.xlu0 %786
  %v789 = vadd.f32 %v778, %v787
  %v790 = vld [vmem:[%s4] sm:$0xf]
  %v791 = vld [vmem:[%s4 + $0x4] sm:$0xf]
  %v792 = vld [vmem:[%s4 + $0x8] sm:$0xf]
  %v793 = vld [vmem:[%s4 + $0xc] sm:$0xf]
  %v794 = vld [vmem:[%s4 + $0x10] sm:$0xf]
  %v795 = vld [vmem:[%s4 + $0x14] sm:$0xf]
  %v796 = vld [vmem:[%s4 + $0x18] sm:$0xf]
  %v797 = vld [vmem:[%s4 + $0x1c] sm:$0xf]
  %v798 = vpack.c.bf16 %v327, %v250
  %v799 = vpack.c.bf16 %v481, %v404
  %v800 = vpack.c.bf16 %v635, %v558
  %v801 = vpack.c.bf16 %v789, %v712
  %v802 = vld [vmem:[%s3 + $0x4] ss:$0 sm:$0xff]
  %v811 = vunpack.c.l.b16 %v790
  %v812 = vunpack.c.l.b16 %v791
  %v813 = vunpack.c.l.b16 %v792
  %v814 = vunpack.c.l.b16 %v793
  %v815 = vunpack.c.l.b16 %v794
  %v816 = vunpack.c.l.b16 %v795
  %v817 = vunpack.c.l.b16 %v796
  %v818 = vunpack.c.l.b16 %v797
  %v819 = vpack.c.b16 %v812, %v811
  %v820 = vpack.c.b16 %v814, %v813
  %v821 = vpack.c.b16 %v816, %v815
  %v822 = vpack.c.b16 %v818, %v817
  %v828 = vsel %vm173, %v798, 0
  %v831 = vsel %vm173, %v799, 0
  %v834 = vsel %vm173, %v800, 0
  %v837 = vsel %vm173, %v801, 0
  %839 = vmatpush.bf16.msra.mxu0 0
  %840 = vmatpush.bf16.msra.mxu0 0
  %841 = vmatpush.bf16.msra.mxu0 0
  %842 = vmatpush.bf16.msra.mxu0 0
  %843 = vmatpush.bf16.msra.mxu0 %v822
  %844 = vmatpush.bf16.msra.mxu0 %v821
  %845 = vmatpush.bf16.msra.mxu0 %v820
  %846 = vmatpush.bf16.msra.mxu0 %v819
  %847 = vmatmul.bf16.gmra.mxu0 %v828
  %v848 = vpop.f32.mrf.mxu0
  %v849 = vadd.f32 %v802, %v848
  %v850 = vpop.f32.mrf.mxu0
  %v851 = vadd.f32 %v802, %v850
  %852 = vmatmul.bf16.gmra.mxu0 %v831
  %v853 = vpop.f32.mrf.mxu0
  %v854 = vadd.f32 %v802, %v853
  %v855 = vpop.f32.mrf.mxu0
  %v856 = vadd.f32 %v802, %v855
  %857 = vmatmul.bf16.gmra.mxu0 %v834
  %v858 = vpop.f32.mrf.mxu0
  %v859 = vadd.f32 %v802, %v858
  %v860 = vpop.f32.mrf.mxu0
  %v861 = vadd.f32 %v802, %v860
  %862 = vmatmul.bf16.gmra.mxu0 %v837
  %v863 = vpop.f32.mrf.mxu0
  %v864 = vadd.f32 %v802, %v863
  %v865 = vpop.f32.mrf.mxu0
  %v866 = vadd.f32 %v802, %v865
  %867 = vdwg.mxu0
  %v868 = vmax.f32 %v849, 0.0
  %v869 = vmax.f32 %v851, 0.0
  %v870 = vmax.f32 %v854, 0.0
  %v871 = vmax.f32 %v856, 0.0
  %v872 = vmax.f32 %v859, 0.0
  %v873 = vmax.f32 %v861, 0.0
  %v874 = vmax.f32 %v864, 0.0
  %v875 = vmax.f32 %v866, 0.0
  %v876 = vld [vmem:[%s1] sm:$0xff]
  %v877 = vld [vmem:[%s1 + $0x8] sm:$0xff]
  %v878 = vld [vmem:[%s1 + $0x10] sm:$0xff]
  %v879 = vld [vmem:[%s1 + $0x18] sm:$0xff]
  %v880 = vld [vmem:[%s1 + $0x20] sm:$0xff]
  %v881 = vld [vmem:[%s1 + $0x28] sm:$0xff]
  %v882 = vld [vmem:[%s1 + $0x30] sm:$0xff]
  %v883 = vld [vmem:[%s1 + $0x38] sm:$0xff]
  %v884 = vld [vmem:[%s1 + $0x40] sm:$0xff]
  %v885 = vld [vmem:[%s1 + $0x48] sm:$0xff]
  %v886 = vld [vmem:[%s1 + $0x50] sm:$0xff]
  %v887 = vld [vmem:[%s1 + $0x58] sm:$0xff]
  %v888 = vld [vmem:[%s1 + $0x60] sm:$0xff]
  %v889 = vld [vmem:[%s1 + $0x68] sm:$0xff]
  %v890 = vld [vmem:[%s1 + $0x70] sm:$0xff]
  %v891 = vld [vmem:[%s1 + $0x78] sm:$0xff]
  %s892 = scalar_lea.vmem %s3, 2
  %v893 = vld [vmem:[%s892] ss:$8 sm:$0x3]
  %v895 = vperm.slane %v893, 0
  %v896 = vperm.slane %v893, 1
  %v899 = vmul.f32 %v876, %v895
  %v900 = vmul.f32 %v877, %v896
  %v901 = vmul.f32 %v878, %v895
  %v902 = vmul.f32 %v879, %v896
  %v903 = vmul.f32 %v880, %v895
  %v904 = vmul.f32 %v881, %v896
  %v905 = vmul.f32 %v882, %v895
  %v906 = vmul.f32 %v883, %v896
  %v907 = vmul.f32 %v884, %v895
  %v908 = vmul.f32 %v885, %v896
  %v909 = vmul.f32 %v886, %v895
  %v910 = vmul.f32 %v887, %v896
  %v911 = vmul.f32 %v888, %v895
  %v912 = vmul.f32 %v889, %v896
  %v913 = vmul.f32 %v890, %v895
  %v914 = vmul.f32 %v891, %v896
  %s915 = scalar_lea.vmem %s3, 3
  %v916 = vld [vmem:[%s915] ss:$8 sm:$0x3]
  %v918 = vperm.slane %v916, 0
  %v919 = vperm.slane %v916, 1
  %v922 = vadd.f32 %v899, %v918
  %v923 = vadd.f32 %v900, %v919
  %v924 = vadd.f32 %v901, %v918
  %v925 = vadd.f32 %v902, %v919
  %v926 = vadd.f32 %v903, %v918
  %v927 = vadd.f32 %v904, %v919
  %v928 = vadd.f32 %v905, %v918
  %v929 = vadd.f32 %v906, %v919
  %v930 = vadd.f32 %v907, %v918
  %v931 = vadd.f32 %v908, %v919
  %v932 = vadd.f32 %v909, %v918
  %v933 = vadd.f32 %v910, %v919
  %v934 = vadd.f32 %v911, %v918
  %v935 = vadd.f32 %v912, %v919
  %v936 = vadd.f32 %v913, %v918
  %v937 = vadd.f32 %v914, %v919
  %v938 = vmax.f32 %v922, 0.0
  %v939 = vmax.f32 %v923, 0.0
  %v940 = vmax.f32 %v924, 0.0
  %v941 = vmax.f32 %v925, 0.0
  %v942 = vmax.f32 %v926, 0.0
  %v943 = vmax.f32 %v927, 0.0
  %v944 = vmax.f32 %v928, 0.0
  %v945 = vmax.f32 %v929, 0.0
  %v946 = vmax.f32 %v930, 0.0
  %v947 = vmax.f32 %v931, 0.0
  %v948 = vmax.f32 %v932, 0.0
  %v949 = vmax.f32 %v933, 0.0
  %v950 = vmax.f32 %v934, 0.0
  %v951 = vmax.f32 %v935, 0.0
  %v952 = vmax.f32 %v936, 0.0
  %v953 = vmax.f32 %v937, 0.0
  %v954 = vld [vmem:[%s4 + $0x20] sm:$0xf]
  %v955 = vld [vmem:[%s4 + $0x24] sm:$0xf]
  %v956 = vld [vmem:[%s4 + $0x28] sm:$0xf]
  %v957 = vld [vmem:[%s4 + $0x2c] sm:$0xf]
  %v958 = vld [vmem:[%s4 + $0x30] sm:$0xf]
  %v959 = vld [vmem:[%s4 + $0x34] sm:$0xf]
  %v960 = vld [vmem:[%s4 + $0x38] sm:$0xf]
  %v961 = vld [vmem:[%s4 + $0x3c] sm:$0xf]
  %v962 = vld [vmem:[%s4 + $0x40] sm:$0xf]
  %v963 = vld [vmem:[%s4 + $0x44] sm:$0xf]
  %v964 = vld [vmem:[%s4 + $0x48] sm:$0xf]
  %v965 = vld [vmem:[%s4 + $0x4c] sm:$0xf]
  %v966 = vld [vmem:[%s4 + $0x50] sm:$0xf]
  %v967 = vld [vmem:[%s4 + $0x54] sm:$0xf]
  %v968 = vld [vmem:[%s4 + $0x58] sm:$0xf]
  %v969 = vld [vmem:[%s4 + $0x5c] sm:$0xf]
  %v970 = vld [vmem:[%s4 + $0x60] sm:$0xf]
  %v971 = vld [vmem:[%s4 + $0x64] sm:$0xf]
  %v972 = vld [vmem:[%s4 + $0x68] sm:$0xf]
  %v973 = vld [vmem:[%s4 + $0x6c] sm:$0xf]
  %v974 = vld [vmem:[%s4 + $0x70] sm:$0xf]
  %v975 = vld [vmem:[%s4 + $0x74] sm:$0xf]
  %v976 = vld [vmem:[%s4 + $0x78] sm:$0xf]
  %v977 = vld [vmem:[%s4 + $0x7c] sm:$0xf]
  %v978 = vld [vmem:[%s4 + $0x80] sm:$0xf]
  %v979 = vld [vmem:[%s4 + $0x84] sm:$0xf]
  %v980 = vld [vmem:[%s4 + $0x88] sm:$0xf]
  %v981 = vld [vmem:[%s4 + $0x8c] sm:$0xf]
  %v982 = vld [vmem:[%s4 + $0x90] sm:$0xf]
  %v983 = vld [vmem:[%s4 + $0x94] sm:$0xf]
  %v984 = vld [vmem:[%s4 + $0x98] sm:$0xf]
  %v985 = vld [vmem:[%s4 + $0x9c] sm:$0xf]
  %v986 = vadd.f32 %v938, %v868
  %v987 = vadd.f32 %v940, %v869
  %v988 = vadd.f32 %v942, %v870
  %v989 = vadd.f32 %v944, %v871
  %v990 = vadd.f32 %v946, %v872
  %v991 = vadd.f32 %v948, %v873
  %v992 = vadd.f32 %v950, %v874
  %v993 = vadd.f32 %v952, %v875
  %v994 = vpack.c.bf16 %v987, %v986
  %v995 = vpack.c.bf16 %v989, %v988
  %v996 = vpack.c.bf16 %v991, %v990
  %v997 = vpack.c.bf16 %v993, %v992
  %v998 = vld [vmem:[%s3 + $0x5] ss:$0 sm:$0xff]
  %v1003 = vunpack.c.l.b16 %v954
  %v1004 = vunpack.c.l.b16 %v955
  %v1005 = vunpack.c.l.b16 %v956
  %v1006 = vunpack.c.l.b16 %v957
  %v1007 = vpack.c.b16 %v1004, %v1003
  %v1008 = vpack.c.b16 %v1006, %v1005
  %v1012 = vsel %vm61, %v994, 0
  %v1015 = vsel %vm61, %v995, 0
  %v1018 = vsel %vm61, %v996, 0
  %v1021 = vsel %vm61, %v997, 0
  %1023 = vmatpush.bf16.msra.mxu0 0
  %1024 = vmatpush.bf16.msra.mxu0 0
  %1025 = vmatpush.bf16.msra.mxu0 0
  %1026 = vmatpush.bf16.msra.mxu0 0
  %1027 = vmatpush.bf16.msra.mxu0 0
  %1028 = vmatpush.bf16.msra.mxu0 0
  %1029 = vmatpush.bf16.msra.mxu0 %v1008
  %1030 = vmatpush.bf16.msra.mxu0 %v1007
  %1031 = vmatmul.bf16.gmra.mxu0 %v1012
  %v1032 = vpop.f32.mrf.mxu0
  %v1033 = vadd.f32 %v998, %v1032
  %v1034 = vpop.f32.mrf.mxu0
  %v1035 = vadd.f32 %v998, %v1034
  %1036 = vmatmul.bf16.gmra.mxu0 %v1015
  %v1037 = vpop.f32.mrf.mxu0
  %v1038 = vadd.f32 %v998, %v1037
  %v1039 = vpop.f32.mrf.mxu0
  %v1040 = vadd.f32 %v998, %v1039
  %1041 = vmatmul.bf16.gmra.mxu0 %v1018
  %v1042 = vpop.f32.mrf.mxu0
  %v1043 = vadd.f32 %v998, %v1042
  %v1044 = vpop.f32.mrf.mxu0
  %v1045 = vadd.f32 %v998, %v1044
  %1046 = vmatmul.bf16.gmra.mxu0 %v1021
  %v1047 = vpop.f32.mrf.mxu0
  %v1048 = vadd.f32 %v998, %v1047
  %v1049 = vpop.f32.mrf.mxu0
  %v1050 = vadd.f32 %v998, %v1049
  %1051 = vdwg.mxu0
  %v1052 = vmax.f32 %v1033, 0.0
  %v1053 = vmax.f32 %v1035, 0.0
  %v1054 = vmax.f32 %v1038, 0.0
  %v1055 = vmax.f32 %v1040, 0.0
  %v1056 = vmax.f32 %v1043, 0.0
  %v1057 = vmax.f32 %v1045, 0.0
  %v1058 = vmax.f32 %v1048, 0.0
  %v1059 = vmax.f32 %v1050, 0.0
  %1068 = vrot.lane.b32.xlu0 %v1052, 32
  %v1069 = vpop.permute.xlu0 %1068
  %1070 = vrot.lane.b32.xlu0 %v1053, 32
  %v1071 = vpop.permute.xlu0 %1070
  %1072 = vrot.lane.b32.xlu0 %v1054, 32
  %v1073 = vpop.permute.xlu0 %1072
  %1074 = vrot.lane.b32.xlu0 %v1055, 32
  %v1075 = vpop.permute.xlu0 %1074
  %1076 = vrot.lane.b32.xlu0 %v1056, 32
  %v1077 = vpop.permute.xlu0 %1076
  %1078 = vrot.lane.b32.xlu0 %v1057, 32
  %v1079 = vpop.permute.xlu0 %1078
  %1080 = vrot.lane.b32.xlu0 %v1058, 32
  %v1081 = vpop.permute.xlu0 %1080
  %1082 = vrot.lane.b32.xlu0 %v1059, 32
  %v1083 = vpop.permute.xlu0 %1082
  %v1092 = vadd.f32 %v938, %v1069
  %v1093 = vadd.f32 %v940, %v1071
  %v1094 = vadd.f32 %v942, %v1073
  %v1095 = vadd.f32 %v944, %v1075
  %v1096 = vadd.f32 %v946, %v1077
  %v1097 = vadd.f32 %v948, %v1079
  %v1098 = vadd.f32 %v950, %v1081
  %v1099 = vadd.f32 %v952, %v1083
  %v1100 = vpack.c.bf16 %v1093, %v1092
  %v1101 = vpack.c.bf16 %v1095, %v1094
  %v1102 = vpack.c.bf16 %v1097, %v1096
  %v1103 = vpack.c.bf16 %v1099, %v1098
  %v1104 = vld [vmem:[%s3 + $0x6] ss:$0 sm:$0xff]
  %1109 = vrot.lane.b32.xlu0 %v1100, 96
  %v1110 = vpop.permute.xlu0 %1109
  %1111 = vrot.lane.b32.xlu0 %v1101, 96
  %v1112 = vpop.permute.xlu0 %1111
  %1113 = vrot.lane.b32.xlu0 %v1102, 96
  %v1114 = vpop.permute.xlu0 %1113
  %1115 = vrot.lane.b32.xlu0 %v1103, 96
  %v1116 = vpop.permute.xlu0 %1115
  %v1121 = vunpack.c.l.b16 %v958
  %v1122 = vunpack.c.l.b16 %v959
  %v1123 = vunpack.c.l.b16 %v960
  %v1124 = vunpack.c.l.b16 %v961
  %v1125 = vpack.c.b16 %v1122, %v1121
  %v1126 = vpack.c.b16 %v1124, %v1123
  %v1130 = vsel %vm61, %v1110, 0
  %v1133 = vsel %vm61, %v1112, 0
  %v1136 = vsel %vm61, %v1114, 0
  %v1139 = vsel %vm61, %v1116, 0
  %1141 = vmatpush.bf16.msra.mxu0 0
  %1142 = vmatpush.bf16.msra.mxu0 0
  %1143 = vmatpush.bf16.msra.mxu0 0
  %1144 = vmatpush.bf16.msra.mxu0 0
  %1145 = vmatpush.bf16.msra.mxu0 0
  %1146 = vmatpush.bf16.msra.mxu0 0
  %1147 = vmatpush.bf16.msra.mxu0 %v1126
  %1148 = vmatpush.bf16.msra.mxu0 %v1125
  %1149 = vmatmul.bf16.gmra.mxu0 %v1130
  %v1150 = vpop.f32.mrf.mxu0
  %v1151 = vadd.f32 %v1104, %v1150
  %v1152 = vpop.f32.mrf.mxu0
  %v1153 = vadd.f32 %v1104, %v1152
  %1154 = vmatmul.bf16.gmra.mxu0 %v1133
  %v1155 = vpop.f32.mrf.mxu0
  %v1156 = vadd.f32 %v1104, %v1155
  %v1157 = vpop.f32.mrf.mxu0
  %v1158 = vadd.f32 %v1104, %v1157
  %1159 = vmatmul.bf16.gmra.mxu0 %v1136
  %v1160 = vpop.f32.mrf.mxu0
  %v1161 = vadd.f32 %v1104, %v1160
  %v1162 = vpop.f32.mrf.mxu0
  %v1163 = vadd.f32 %v1104, %v1162
  %1164 = vmatmul.bf16.gmra.mxu0 %v1139
  %v1165 = vpop.f32.mrf.mxu0
  %v1166 = vadd.f32 %v1104, %v1165
  %v1167 = vpop.f32.mrf.mxu0
  %v1168 = vadd.f32 %v1104, %v1167
  %1169 = vdwg.mxu0
  %v1170 = vmax.f32 %v1151, 0.0
  %v1171 = vmax.f32 %v1153, 0.0
  %v1172 = vmax.f32 %v1156, 0.0
  %v1173 = vmax.f32 %v1158, 0.0
  %v1174 = vmax.f32 %v1161, 0.0
  %v1175 = vmax.f32 %v1163, 0.0
  %v1176 = vmax.f32 %v1166, 0.0
  %v1177 = vmax.f32 %v1168, 0.0
  %1186 = vrot.lane.b32.xlu0 %v1170, 64
  %v1187 = vpop.permute.xlu0 %1186
  %1188 = vrot.lane.b32.xlu0 %v1171, 64
  %v1189 = vpop.permute.xlu0 %1188
  %1190 = vrot.lane.b32.xlu0 %v1172, 64
  %v1191 = vpop.permute.xlu0 %1190
  %1192 = vrot.lane.b32.xlu0 %v1173, 64
  %v1193 = vpop.permute.xlu0 %1192
  %1194 = vrot.lane.b32.xlu0 %v1174, 64
  %v1195 = vpop.permute.xlu0 %1194
  %1196 = vrot.lane.b32.xlu0 %v1175, 64
  %v1197 = vpop.permute.xlu0 %1196
  %1198 = vrot.lane.b32.xlu0 %v1176, 64
  %v1199 = vpop.permute.xlu0 %1198
  %1200 = vrot.lane.b32.xlu0 %v1177, 64
  %v1201 = vpop.permute.xlu0 %1200
  %v1210 = vadd.f32 %v938, %v1187
  %v1211 = vadd.f32 %v940, %v1189
  %v1212 = vadd.f32 %v942, %v1191
  %v1213 = vadd.f32 %v944, %v1193
  %v1214 = vadd.f32 %v946, %v1195
  %v1215 = vadd.f32 %v948, %v1197
  %v1216 = vadd.f32 %v950, %v1199
  %v1217 = vadd.f32 %v952, %v1201
  %v1218 = vpack.c.bf16 %v1211, %v1210
  %v1219 = vpack.c.bf16 %v1213, %v1212
  %v1220 = vpack.c.bf16 %v1215, %v1214
  %v1221 = vpack.c.bf16 %v1217, %v1216
  %v1222 = vld [vmem:[%s3 + $0x7] ss:$0 sm:$0xff]
  %1227 = vrot.lane.b32.xlu0 %v1218, 64
  %v1228 = vpop.permute.xlu0 %1227
  %1229 = vrot.lane.b32.xlu0 %v1219, 64
  %v1230 = vpop.permute.xlu0 %1229
  %1231 = vrot.lane.b32.xlu0 %v1220, 64
  %v1232 = vpop.permute.xlu0 %1231
  %1233 = vrot.lane.b32.xlu0 %v1221, 64
  %v1234 = vpop.permute.xlu0 %1233
  %v1243 = vunpack.c.l.b16 %v962
  %v1244 = vunpack.c.l.b16 %v963
  %v1245 = vunpack.c.l.b16 %v964
  %v1246 = vunpack.c.l.b16 %v965
  %v1247 = vunpack.c.l.b16 %v966
  %v1248 = vunpack.c.l.b16 %v967
  %v1249 = vunpack.c.l.b16 %v968
  %v1250 = vunpack.c.l.b16 %v969
  %v1251 = vpack.c.b16 %v1244, %v1243
  %v1252 = vpack.c.b16 %v1246, %v1245
  %v1253 = vpack.c.b16 %v1248, %v1247
  %v1254 = vpack.c.b16 %v1250, %v1249
  %v1260 = vsel %vm173, %v1228, 0
  %v1263 = vsel %vm173, %v1230, 0
  %v1266 = vsel %vm173, %v1232, 0
  %v1269 = vsel %vm173, %v1234, 0
  %1271 = vmatpush.bf16.msra.mxu0 0
  %1272 = vmatpush.bf16.msra.mxu0 0
  %1273 = vmatpush.bf16.msra.mxu0 0
  %1274 = vmatpush.bf16.msra.mxu0 0
  %1275 = vmatpush.bf16.msra.mxu0 %v1254
  %1276 = vmatpush.bf16.msra.mxu0 %v1253
  %1277 = vmatpush.bf16.msra.mxu0 %v1252
  %1278 = vmatpush.bf16.msra.mxu0 %v1251
  %1279 = vmatmul.bf16.gmra.mxu0 %v1260
  %v1280 = vpop.f32.mrf.mxu0
  %v1281 = vadd.f32 %v1222, %v1280
  %v1282 = vpop.f32.mrf.mxu0
  %v1283 = vadd.f32 %v1222, %v1282
  %1284 = vmatmul.bf16.gmra.mxu0 %v1263
  %v1285 = vpop.f32.mrf.mxu0
  %v1286 = vadd.f32 %v1222, %v1285
  %v1287 = vpop.f32.mrf.mxu0
  %v1288 = vadd.f32 %v1222, %v1287
  %1289 = vmatmul.bf16.gmra.mxu0 %v1266
  %v1290 = vpop.f32.mrf.mxu0
  %v1291 = vadd.f32 %v1222, %v1290
  %v1292 = vpop.f32.mrf.mxu0
  %v1293 = vadd.f32 %v1222, %v1292
  %1294 = vmatmul.bf16.gmra.mxu0 %v1269
  %v1295 = vpop.f32.mrf.mxu0
  %v1296 = vadd.f32 %v1222, %v1295
  %v1297 = vpop.f32.mrf.mxu0
  %v1298 = vadd.f32 %v1222, %v1297
  %1299 = vdwg.mxu0
  %v1300 = vmax.f32 %v1281, 0.0
  %v1301 = vmax.f32 %v1283, 0.0
  %v1302 = vmax.f32 %v1286, 0.0
  %v1303 = vmax.f32 %v1288, 0.0
  %v1304 = vmax.f32 %v1291, 0.0
  %v1305 = vmax.f32 %v1293, 0.0
  %v1306 = vmax.f32 %v1296, 0.0
  %v1307 = vmax.f32 %v1298, 0.0
  %v1308 = vadd.f32 %v939, %v1300
  %v1309 = vadd.f32 %v941, %v1301
  %v1310 = vadd.f32 %v943, %v1302
  %v1311 = vadd.f32 %v945, %v1303
  %v1312 = vadd.f32 %v947, %v1304
  %v1313 = vadd.f32 %v949, %v1305
  %v1314 = vadd.f32 %v951, %v1306
  %v1315 = vadd.f32 %v953, %v1307
  %v1316 = vpack.c.bf16 %v1309, %v1308
  %v1317 = vpack.c.bf16 %v1311, %v1310
  %v1318 = vpack.c.bf16 %v1313, %v1312
  %v1319 = vpack.c.bf16 %v1315, %v1314
  %v1320 = vld [vmem:[%s3 + $0x10] ss:$0 sm:$0xff]
  %v1337 = vunpack.c.l.b16 %v970
  %v1338 = vunpack.c.l.b16 %v971
  %v1339 = vunpack.c.l.b16 %v972
  %v1340 = vunpack.c.l.b16 %v973
  %v1341 = vunpack.c.l.b16 %v974
  %v1342 = vunpack.c.l.b16 %v975
  %v1343 = vunpack.c.l.b16 %v976
  %v1344 = vunpack.c.l.b16 %v977
  %v1345 = vunpack.c.l.b16 %v978
  %v1346 = vunpack.c.l.b16 %v979
  %v1347 = vunpack.c.l.b16 %v980
  %v1348 = vunpack.c.l.b16 %v981
  %v1349 = vunpack.c.l.b16 %v982
  %v1350 = vunpack.c.l.b16 %v983
  %v1351 = vunpack.c.l.b16 %v984
  %v1352 = vunpack.c.l.b16 %v985
  %v1353 = vpack.c.b16 %v1338, %v1337
  %v1354 = vpack.c.b16 %v1340, %v1339
  %v1355 = vpack.c.b16 %v1342, %v1341
  %v1356 = vpack.c.b16 %v1344, %v1343
  %v1357 = vpack.c.b16 %v1346, %v1345
  %v1358 = vpack.c.b16 %v1348, %v1347
  %v1359 = vpack.c.b16 %v1350, %v1349
  %v1360 = vpack.c.b16 %v1352, %v1351
  %1369 = vmatpush.bf16.msra.mxu0 %v1360
  %1370 = vmatpush.bf16.msra.mxu0 %v1359
  %1371 = vmatpush.bf16.msra.mxu0 %v1358
  %1372 = vmatpush.bf16.msra.mxu0 %v1357
  %1373 = vmatpush.bf16.msra.mxu0 %v1356
  %1374 = vmatpush.bf16.msra.mxu0 %v1355
  %1375 = vmatpush.bf16.msra.mxu0 %v1354
  %1376 = vmatpush.bf16.msra.mxu0 %v1353
  %1377 = vmatmul.bf16.gmra.mxu0 %v1316
  %v1378 = vpop.f32.mrf.mxu0
  %v1379 = vadd.f32 %v1320, %v1378
  %v1380 = vpop.f32.mrf.mxu0
  %v1381 = vadd.f32 %v1320, %v1380
  %1382 = vmatmul.bf16.gmra.mxu0 %v1317
  %v1383 = vpop.f32.mrf.mxu0
  %v1384 = vadd.f32 %v1320, %v1383
  %v1385 = vpop.f32.mrf.mxu0
  %v1386 = vadd.f32 %v1320, %v1385
  %1387 = vmatmul.bf16.gmra.mxu0 %v1318
  %v1388 = vpop.f32.mrf.mxu0
  %v1389 = vadd.f32 %v1320, %v1388
  %v1390 = vpop.f32.mrf.mxu0
  %v1391 = vadd.f32 %v1320, %v1390
  %1392 = vmatmul.bf16.gmra.mxu0 %v1319
  %v1393 = vpop.f32.mrf.mxu0
  %v1394 = vadd.f32 %v1320, %v1393
  %v1395 = vpop.f32.mrf.mxu0
  %v1396 = vadd.f32 %v1320, %v1395
  %1397 = vdwg.mxu0
  %v1398 = vxor.u32 %v1379, 2147483648
  %v1399 = vxor.u32 %v1381, 2147483648
  %v1400 = vxor.u32 %v1384, 2147483648
  %v1401 = vxor.u32 %v1386, 2147483648
  %v1402 = vxor.u32 %v1389, 2147483648
  %v1403 = vxor.u32 %v1391, 2147483648
  %v1404 = vxor.u32 %v1394, 2147483648
  %v1405 = vxor.u32 %v1396, 2147483648
  %v1406 = vmul.f32 %v1398, 1.442695
  %v1407 = vpow.pop %v1406
  %v1408 = vmul.f32 %v1399, 1.442695
  %v1409 = vpow.pop %v1408
  %v1410 = vmul.f32 %v1400, 1.442695
  %v1411 = vpow.pop %v1410
  %v1412 = vmul.f32 %v1401, 1.442695
  %v1413 = vpow.pop %v1412
  %v1414 = vmul.f32 %v1402, 1.442695
  %v1415 = vpow.pop %v1414
  %v1416 = vmul.f32 %v1403, 1.442695
  %v1417 = vpow.pop %v1416
  %v1418 = vmul.f32 %v1404, 1.442695
  %v1419 = vpow.pop %v1418
  %v1420 = vmul.f32 %v1405, 1.442695
  %v1421 = vpow.pop %v1420
  %v1422 = vadd.f32 %v1407, 1.0
  %v1423 = vadd.f32 %v1409, 1.0
  %v1424 = vadd.f32 %v1411, 1.0
  %v1425 = vadd.f32 %v1413, 1.0
  %v1426 = vadd.f32 %v1415, 1.0
  %v1427 = vadd.f32 %v1417, 1.0
  %v1428 = vadd.f32 %v1419, 1.0
  %v1429 = vadd.f32 %v1421, 1.0
  %v1430 = vrcp.pop %v1422
  %v1431 = vmul.f32 %v1422, %v1430
  %v1432 = vsub.f32 1.0, %v1431
  %v1433 = vmul.f32 %v1430, %v1432
  %v1434 = vadd.f32 %v1430, %v1433
  %vm1435 = vweird.f32 %v1422
  %vm1436 = vweird.f32 %v1430
  %vm1437 = vmor %vm1435, %vm1436
  %v1438 = vsel %vm1437, %v1430, %v1434
  %v1439 = vand.u32 2147483647, %v1422
  %vm1440 = vcmp.eq.f32.partialorder %v1439, 8.507059e+37
  %v1441 = vand.u32 %v1422, 2147483648
  %v1442 = vor.u32 1.1754944e-38, %v1441
  %v1443 = vsel %vm1440, %v1442, %v1438
  %v1444 = vmul.f32 1.0, %v1443
  %v1445 = vrcp.pop %v1423
  %v1446 = vmul.f32 %v1423, %v1445
  %v1447 = vsub.f32 1.0, %v1446
  %v1448 = vmul.f32 %v1445, %v1447
  %v1449 = vadd.f32 %v1445, %v1448
  %vm1450 = vweird.f32 %v1423
  %vm1451 = vweird.f32 %v1445
  %vm1452 = vmor %vm1450, %vm1451
  %v1453 = vsel %vm1452, %v1445, %v1449
  %v1454 = vand.u32 2147483647, %v1423
  %vm1455 = vcmp.eq.f32.partialorder %v1454, 8.507059e+37
  %v1456 = vand.u32 %v1423, 2147483648
  %v1457 = vor.u32 1.1754944e-38, %v1456
  %v1458 = vsel %vm1455, %v1457, %v1453
  %v1459 = vmul.f32 1.0, %v1458
  %v1460 = vrcp.pop %v1424
  %v1461 = vmul.f32 %v1424, %v1460
  %v1462 = vsub.f32 1.0, %v1461
  %v1463 = vmul.f32 %v1460, %v1462
  %v1464 = vadd.f32 %v1460, %v1463
  %vm1465 = vweird.f32 %v1424
  %vm1466 = vweird.f32 %v1460
  %vm1467 = vmor %vm1465, %vm1466
  %v1468 = vsel %vm1467, %v1460, %v1464
  %v1469 = vand.u32 2147483647, %v1424
  %vm1470 = vcmp.eq.f32.partialorder %v1469, 8.507059e+37
  %v1471 = vand.u32 %v1424, 2147483648
  %v1472 = vor.u32 1.1754944e-38, %v1471
  %v1473 = vsel %vm1470, %v1472, %v1468
  %v1474 = vmul.f32 1.0, %v1473
  %v1475 = vrcp.pop %v1425
  %v1476 = vmul.f32 %v1425, %v1475
  %v1477 = vsub.f32 1.0, %v1476
  %v1478 = vmul.f32 %v1475, %v1477
  %v1479 = vadd.f32 %v1475, %v1478
  %vm1480 = vweird.f32 %v1425
  %vm1481 = vweird.f32 %v1475
  %vm1482 = vmor %vm1480, %vm1481
  %v1483 = vsel %vm1482, %v1475, %v1479
  %v1484 = vand.u32 2147483647, %v1425
  %vm1485 = vcmp.eq.f32.partialorder %v1484, 8.507059e+37
  %v1486 = vand.u32 %v1425, 2147483648
  %v1487 = vor.u32 1.1754944e-38, %v1486
  %v1488 = vsel %vm1485, %v1487, %v1483
  %v1489 = vmul.f32 1.0, %v1488
  %v1490 = vrcp.pop %v1426
  %v1491 = vmul.f32 %v1426, %v1490
  %v1492 = vsub.f32 1.0, %v1491
  %v1493 = vmul.f32 %v1490, %v1492
  %v1494 = vadd.f32 %v1490, %v1493
  %vm1495 = vweird.f32 %v1426
  %vm1496 = vweird.f32 %v1490
  %vm1497 = vmor %vm1495, %vm1496
  %v1498 = vsel %vm1497, %v1490, %v1494
  %v1499 = vand.u32 2147483647, %v1426
  %vm1500 = vcmp.eq.f32.partialorder %v1499, 8.507059e+37
  %v1501 = vand.u32 %v1426, 2147483648
  %v1502 = vor.u32 1.1754944e-38, %v1501
  %v1503 = vsel %vm1500, %v1502, %v1498
  %v1504 = vmul.f32 1.0, %v1503
  %v1505 = vrcp.pop %v1427
  %v1506 = vmul.f32 %v1427, %v1505
  %v1507 = vsub.f32 1.0, %v1506
  %v1508 = vmul.f32 %v1505, %v1507
  %v1509 = vadd.f32 %v1505, %v1508
  %vm1510 = vweird.f32 %v1427
  %vm1511 = vweird.f32 %v1505
  %vm1512 = vmor %vm1510, %vm1511
  %v1513 = vsel %vm1512, %v1505, %v1509
  %v1514 = vand.u32 2147483647, %v1427
  %vm1515 = vcmp.eq.f32.partialorder %v1514, 8.507059e+37
  %v1516 = vand.u32 %v1427, 2147483648
  %v1517 = vor.u32 1.1754944e-38, %v1516
  %v1518 = vsel %vm1515, %v1517, %v1513
  %v1519 = vmul.f32 1.0, %v1518
  %v1520 = vrcp.pop %v1428
  %v1521 = vmul.f32 %v1428, %v1520
  %v1522 = vsub.f32 1.0, %v1521
  %v1523 = vmul.f32 %v1520, %v1522
  %v1524 = vadd.f32 %v1520, %v1523
  %vm1525 = vweird.f32 %v1428
  %vm1526 = vweird.f32 %v1520
  %vm1527 = vmor %vm1525, %vm1526
  %v1528 = vsel %vm1527, %v1520, %v1524
  %v1529 = vand.u32 2147483647, %v1428
  %vm1530 = vcmp.eq.f32.partialorder %v1529, 8.507059e+37
  %v1531 = vand.u32 %v1428, 2147483648
  %v1532 = vor.u32 1.1754944e-38, %v1531
  %v1533 = vsel %vm1530, %v1532, %v1528
  %v1534 = vmul.f32 1.0, %v1533
  %v1535 = vrcp.pop %v1429
  %v1536 = vmul.f32 %v1429, %v1535
  %v1537 = vsub.f32 1.0, %v1536
  %v1538 = vmul.f32 %v1535, %v1537
  %v1539 = vadd.f32 %v1535, %v1538
  %vm1540 = vweird.f32 %v1429
  %vm1541 = vweird.f32 %v1535
  %vm1542 = vmor %vm1540, %vm1541
  %v1543 = vsel %vm1542, %v1535, %v1539
  %v1544 = vand.u32 2147483647, %v1429
  %vm1545 = vcmp.eq.f32.partialorder %v1544, 8.507059e+37
  %v1546 = vand.u32 %v1429, 2147483648
  %v1547 = vor.u32 1.1754944e-38, %v1546
  %v1548 = vsel %vm1545, %v1547, %v1543
  %v1549 = vmul.f32 1.0, %v1548
  %vm1550 = vcmask 130048
  %1551 = vst.msk [vmem:[%s5] sm:$0xff] %vm1550, %v1444
  %1552 = vst.msk [vmem:[%s5 + $0x8] sm:$0xff] %vm1550, %v1459
  %1553 = vst.msk [vmem:[%s5 + $0x10] sm:$0xff] %vm1550, %v1474
  %1554 = vst.msk [vmem:[%s5 + $0x18] sm:$0xff] %vm1550, %v1489
  %1555 = vst.msk [vmem:[%s5 + $0x20] sm:$0xff] %vm1550, %v1504
  %1556 = vst.msk [vmem:[%s5 + $0x28] sm:$0xff] %vm1550, %v1519
  %1557 = vst.msk [vmem:[%s5 + $0x30] sm:$0xff] %vm1550, %v1534
  %1558 = vst.msk [vmem:[%s5 + $0x38] sm:$0xff] %vm1550, %v1549
  // Predicated region
  $region22: #{erb_decoder_forward.1} parent=0 // pred_check
    _
  $region23: #{erb_decoder_forward.1} parent=0 // pred_check_branch
    %1560 = sbr.rel (0) target = $region25
  $region24: #{erb_decoder_forward.1} parent=0 // pred_region
    _
  $region25: #{erb_decoder_forward.1} parent=0 // pred_fallthru
    _
  // Predicated region
  $region26: #{erb_decoder_forward.1} parent=0 // pred_check
    _
  $region27: #{erb_decoder_forward.1} parent=0 // pred_check_branch
    %1562 = sbr.rel (0) target = $region29
  $region28: #{erb_decoder_forward.1} parent=0 // pred_region
    _
  $region29: #{erb_decoder_forward.1} parent=0 // pred_fallthru
    _

</llo_original>
